<compile_context>
chip_gen: v7x
topology: tpu7x:2x2x1
jax: 0.10.0
libtpu: 0.0.40
codegen_flags: <defaults>
</compile_context>

<pallas_src>
import jax
import jax.numpy as jnp
from jax.experimental import pallas as pl
from jax.experimental.pallas import tpu as pltpu

BN_EPS = 1e-5
NORM_EPS = 1e-12  # F.normalize eps


# ---------------------------------------------------------------------------
# Kernel: x @ W1 + b1 -> ReLU -> @ W2' + b2' -> ReLU -> @ W3' + b3' -> L2-norm
# (BN already folded into W2'/b2' and W3'/b3' in the wrapper.)
# ---------------------------------------------------------------------------
def fmri_encoder_kernel(x_ref, w1_ref, b1_ref, w2_ref, b2_ref, w3_ref, b3_ref, o_ref):
    x = x_ref[...]  # (tb, fmri_dim) bf16

    # block 1: Linear -> ReLU (Dropout = eval identity; BN folded into next Linear)
    h = jnp.dot(x, w1_ref[...], preferred_element_type=jnp.float32) + b1_ref[...]
    h = jnp.maximum(h, 0.0).astype(jnp.bfloat16)

    # block 2
    h = jnp.dot(h, w2_ref[...], preferred_element_type=jnp.float32) + b2_ref[...]
    h = jnp.maximum(h, 0.0).astype(jnp.bfloat16)

    # output projection + F.normalize(dim=-1)
    out = jnp.dot(h, w3_ref[...], preferred_element_type=jnp.float32) + b3_ref[...]
    sumsq = jnp.sum(out * out, axis=-1, keepdims=True)
    inv = jax.lax.rsqrt(jnp.maximum(sumsq, NORM_EPS * NORM_EPS))  # == 1/max(||out||, eps)
    o_ref[...] = (out * inv).astype(o_ref.dtype)


# ---------------------------------------------------------------------------
# Wrapper
# ---------------------------------------------------------------------------
def fmri_encoder(x, folded_params, *, tb=128):
    """x: (B, fmri_dim) f32.  folded_params: (w1,b1,w2,b2,w3,b3) — weights bf16, biases f32."""
    w1, b1, w2, b2, w3, b3 = folded_params
    B, fmri_dim = x.shape
    h1 = w1.shape[1]
    h2 = w2.shape[1]
    clip_dim = w3.shape[1]

    # Pad ragged batches up to a multiple of the batch tile.
    Bp = ((B + tb - 1) // tb) * tb
    if Bp != B:
        x = jnp.pad(x, ((0, Bp - B), (0, 0)))
    x = x.astype(jnp.bfloat16)  # cast once in the wrapper (halves input DMA bytes)

    # x / out stream over the batch grid axis; every parameter is a full block with a
    # constant index map (so it is fetched once and stays resident across the grid).
    x_spec = pl.BlockSpec((tb, fmri_dim), lambda i: (i, 0))
    param_specs = [pl.BlockSpec(p.shape, lambda i: (0, 0)) for p in folded_params]
    out_spec = pl.BlockSpec((tb, clip_dim), lambda i: (i, 0))

    grid_spec = pltpu.PrefetchScalarGridSpec(
        num_scalar_prefetch=0,
        grid=(Bp // tb,),
        in_specs=[x_spec] + param_specs,
        out_specs=out_spec,
        scratch_shapes=[],
    )

    flops = 2 * Bp * (fmri_dim * h1 + h1 * h2 + h2 * clip_dim)
    bytes_accessed = (
        Bp * fmri_dim * 2                                   # x (bf16)
        + (fmri_dim * h1 + h1 * h2 + h2 * clip_dim) * 2     # weights (bf16)
        + (h1 + h2 + clip_dim) * 4                          # biases (f32)
        + Bp * clip_dim * 4                                 # output (f32)
    )
    cost = pl.CostEstimate(
        flops=flops, transcendentals=Bp, bytes_accessed=bytes_accessed
    )

    out = pl.pallas_call(
        fmri_encoder_kernel,
        out_shape=jax.ShapeDtypeStruct((Bp, clip_dim), jnp.float32),
        grid_spec=grid_spec,
        compiler_params=pltpu.CompilerParams(
            dimension_semantics=("parallel",),      # batch axis shards across TCs (v7x)
            vmem_limit_bytes=64 * 1024 * 1024,
        ),
        cost_estimate=cost,
    )(x, *folded_params)

    return out[:B]


# ---------------------------------------------------------------------------
# Parameter construction (PyTorch-equivalent raw params) and BN folding.
# ---------------------------------------------------------------------------
def init_params(key, fmri_dim, hidden_dims, clip_dim):
    """Deterministic synthetic parameters (shapes match the PyTorch module; W transposed)."""
    dims = [fmri_dim] + list(hidden_dims)
    params = []
    keys = jax.random.split(key, 2 * len(hidden_dims) + 1)
    ki = 0
    for d_in, d_out in zip(dims[:-1], dims[1:]):
        kw, kb = jax.random.split(keys[ki]); ki += 1
        scale = 1.0 / jnp.sqrt(d_in)
        w = jax.random.uniform(kw, (d_in, d_out), jnp.float32, -scale, scale)
        b = jax.random.uniform(kb, (1, d_out), jnp.float32, -scale, scale)
        # BatchNorm1d params: gamma, beta, running_mean, running_var
        kg, kv = jax.random.split(keys[ki]); ki += 1
        gamma = 1.0 + 0.1 * jax.random.normal(kg, (1, d_out), jnp.float32)
        beta = 0.1 * jax.random.normal(kv, (1, d_out), jnp.float32)
        rmean = 0.05 * jax.random.normal(jax.random.fold_in(kg, 1), (1, d_out), jnp.float32)
        rvar = 0.5 + jax.random.uniform(jax.random.fold_in(kv, 1), (1, d_out), jnp.float32)
        params.extend([w, b, gamma, beta, rmean, rvar])
    # final Linear
    kw, kb = jax.random.split(keys[ki])
    d_in = dims[-1]
    scale = 1.0 / jnp.sqrt(d_in)
    w = jax.random.uniform(kw, (d_in, clip_dim), jnp.float32, -scale, scale)
    b = jax.random.uniform(kb, (1, clip_dim), jnp.float32, -scale, scale)
    params.extend([w, b])
    return tuple(params)


def fold_params(raw):
    """Fold eval-mode BatchNorm (after ReLU) into the following Linear; cast weights to bf16."""
    (w1, b1, g1, be1, m1, v1,
     w2, b2, g2, be2, m2, v2,
     w3, b3) = raw
    s1 = g1 * jax.lax.rsqrt(v1 + BN_EPS)       # (1, h1)
    t1 = be1 - m1 * s1
    s2 = g2 * jax.lax.rsqrt(v2 + BN_EPS)       # (1, h2)
    t2 = be2 - m2 * s2
    w2f = s1.reshape(-1, 1) * w2               # diag(s1) @ W2
    b2f = b2 + t1 @ w2
    w3f = s2.reshape(-1, 1) * w3               # diag(s2) @ W3
    b3f = b3 + t2 @ w3
    return (w1.astype(jnp.bfloat16), b1,
            w2f.astype(jnp.bfloat16), b2f,
            w3f.astype(jnp.bfloat16), b3f)


# ---------------------------------------------------------------------------
# References
# ---------------------------------------------------------------------------
def reference_forward_f32(x, raw):
    """PyTorch eval-mode semantics, unfolded, full f32."""
    (w1, b1, g1, be1, m1, v1,
     w2, b2, g2, be2, m2, v2,
     w3, b3) = raw
    h = jnp.maximum(x @ w1 + b1, 0.0)
    h = (h - m1) * jax.lax.rsqrt(v1 + BN_EPS) * g1 + be1
    h = jnp.maximum(h @ w2 + b2, 0.0)
    h = (h - m2) * jax.lax.rsqrt(v2 + BN_EPS) * g2 + be2
    out = h @ w3 + b3
    norm = jnp.sqrt(jnp.sum(out * out, axis=-1, keepdims=True))
    return out / jnp.maximum(norm, NORM_EPS)


def reference_forward_folded(x, folded):
    """Same folded bf16 math as the kernel, in plain JAX (tight numeric match)."""
    w1, b1, w2, b2, w3, b3 = folded
    h = jnp.dot(x.astype(jnp.bfloat16), w1, preferred_element_type=jnp.float32) + b1
    h = jnp.maximum(h, 0.0).astype(jnp.bfloat16)
    h = jnp.dot(h, w2, preferred_element_type=jnp.float32) + b2
    h = jnp.maximum(h, 0.0).astype(jnp.bfloat16)
    out = jnp.dot(h, w3, preferred_element_type=jnp.float32) + b3
    sumsq = jnp.sum(out * out, axis=-1, keepdims=True)
    return out * jax.lax.rsqrt(jnp.maximum(sumsq, NORM_EPS * NORM_EPS))


if __name__ == "__main__":
    # Small shapes consistent with the module structure (fmri -> h1 -> h2 -> clip),
    # lane-dense (multiples of 128) and a batch that gives >=2 grid steps at tb=128.
    B, FMRI_DIM, CLIP_DIM = 256, 256, 128
    HIDDEN_DIMS = [512, 256]
    TB = 128

    key = jax.random.PRNGKey(0)
    k_x, k_p = jax.random.split(key)
    x = jax.random.normal(k_x, (B, FMRI_DIM), jnp.float32)
    raw_params = init_params(k_p, FMRI_DIM, HIDDEN_DIMS, CLIP_DIM)
    folded = fold_params(raw_params)

    out = fmri_encoder(x, folded, tb=TB)
    out = jax.block_until_ready(out)
    assert out.shape == (B, CLIP_DIM)

    # Tight check against the identical folded/bf16 computation in plain JAX.
    ref_matched = reference_forward_folded(x, folded)
    assert jnp.allclose(out, ref_matched, atol=1e-3, rtol=1e-3), "mismatch vs folded bf16 ref"

    # Loose check against full-f32, unfolded PyTorch eval-mode semantics
    # (difference is only bf16 weight/activation rounding).
    ref_f32 = reference_forward_f32(x, raw_params)
    assert jnp.allclose(out, ref_f32, atol=3e-2, rtol=3e-2), "mismatch vs f32 eval-mode ref"

    # Ragged-batch path (wrapper pads to a multiple of tb and slices the result).
    out_ragged = jax.block_until_ready(fmri_encoder(x[:200], folded, tb=TB))
    assert out_ragged.shape == (200, CLIP_DIM)
    assert jnp.allclose(out_ragged, ref_matched[:200], atol=1e-3, rtol=1e-3), "ragged mismatch"

    print("KERNEL_OK")
</pallas_src>

<mosaic_0001>
module attributes {stable_mosaic.version = 11 : i64} {
  func.func @fmri_encoder_kernel(%arg0: i32, %arg1: memref<128x256xbf16, #tpu.memory_space<vmem>>, %arg2: memref<256x512xbf16, #tpu.memory_space<vmem>>, %arg3: memref<1x512xf32, #tpu.memory_space<vmem>>, %arg4: memref<512x256xbf16, #tpu.memory_space<vmem>>, %arg5: memref<1x256xf32, #tpu.memory_space<vmem>>, %arg6: memref<256x128xbf16, #tpu.memory_space<vmem>>, %arg7: memref<1x128xf32, #tpu.memory_space<vmem>>, %arg8: memref<128x128xf32, #tpu.memory_space<vmem>>) attributes {dimension_semantics = [#tpu.dimension_semantics<parallel>], iteration_bounds = array<i64: 2>, scalar_prefetch = 0 : i64, scratch_operands = 0 : i64, tpu.core_type = #tpu.core_type<tc>, window_params = [{transform_indices = @transform_0, window_bounds = array<i64: 128, 256>}, {pipeline_mode = #tpu.pipeline_mode<synchronous>, transform_indices = @transform_1, window_bounds = array<i64: 256, 512>}, {pipeline_mode = #tpu.pipeline_mode<synchronous>, transform_indices = @transform_2, window_bounds = array<i64: 1, 512>}, {pipeline_mode = #tpu.pipeline_mode<synchronous>, transform_indices = @transform_3, window_bounds = array<i64: 512, 256>}, {pipeline_mode = #tpu.pipeline_mode<synchronous>, transform_indices = @transform_4, window_bounds = array<i64: 1, 256>}, {pipeline_mode = #tpu.pipeline_mode<synchronous>, transform_indices = @transform_5, window_bounds = array<i64: 256, 128>}, {pipeline_mode = #tpu.pipeline_mode<synchronous>, transform_indices = @transform_6, window_bounds = array<i64: 1, 128>}, {transform_indices = @transform_7, window_bounds = array<i64: 128, 128>}]} {
    %c0 = arith.constant 0 : index
    %c0_0 = arith.constant 0 : index
    %0 = vector.load %arg1[%c0, %c0_0] : memref<128x256xbf16, #tpu.memory_space<vmem>>, vector<128x256xbf16>
    %c0_1 = arith.constant 0 : index
    %c0_2 = arith.constant 0 : index
    %1 = vector.load %arg2[%c0_1, %c0_2] : memref<256x512xbf16, #tpu.memory_space<vmem>>, vector<256x512xbf16>
    %cst = arith.constant dense<0.000000e+00> : vector<128x512xf32>
    %2 = tpu.matmul %0, %1, %cst {dimension_numbers = #tpu.dot_dimension_numbers<[1], [0], [0], [1], [0, 0, 1, 1], [], []>} : vector<128x256xbf16>, vector<256x512xbf16>, vector<128x512xf32> -> vector<128x512xf32>
    %c0_3 = arith.constant 0 : index
    %c0_4 = arith.constant 0 : index
    %3 = vector.load %arg3[%c0_3, %c0_4] : memref<1x512xf32, #tpu.memory_space<vmem>>, vector<1x512xf32>
    %4 = vector.broadcast %3 : vector<1x512xf32> to vector<128x512xf32>
    %5 = arith.addf %2, %4 : vector<128x512xf32>
    %cst_5 = arith.constant 0.000000e+00 : f32
    %6 = vector.broadcast %cst_5 : f32 to vector<128x512xf32>
    %7 = arith.maximumf %5, %6 : vector<128x512xf32>
    %8 = arith.truncf %7 : vector<128x512xf32> to vector<128x512xbf16>
    %c0_6 = arith.constant 0 : index
    %c0_7 = arith.constant 0 : index
    %9 = vector.load %arg4[%c0_6, %c0_7] : memref<512x256xbf16, #tpu.memory_space<vmem>>, vector<512x256xbf16>
    %cst_8 = arith.constant dense<0.000000e+00> : vector<128x256xf32>
    %10 = tpu.matmul %8, %9, %cst_8 {dimension_numbers = #tpu.dot_dimension_numbers<[1], [0], [0], [1], [0, 0, 1, 1], [], []>} : vector<128x512xbf16>, vector<512x256xbf16>, vector<128x256xf32> -> vector<128x256xf32>
    %c0_9 = arith.constant 0 : index
    %c0_10 = arith.constant 0 : index
    %11 = vector.load %arg5[%c0_9, %c0_10] : memref<1x256xf32, #tpu.memory_space<vmem>>, vector<1x256xf32>
    %12 = vector.broadcast %11 : vector<1x256xf32> to vector<128x256xf32>
    %13 = arith.addf %10, %12 : vector<128x256xf32>
    %cst_11 = arith.constant 0.000000e+00 : f32
    %14 = vector.broadcast %cst_11 : f32 to vector<128x256xf32>
    %15 = arith.maximumf %13, %14 : vector<128x256xf32>
    %16 = arith.truncf %15 : vector<128x256xf32> to vector<128x256xbf16>
    %c0_12 = arith.constant 0 : index
    %c0_13 = arith.constant 0 : index
    %17 = vector.load %arg6[%c0_12, %c0_13] : memref<256x128xbf16, #tpu.memory_space<vmem>>, vector<256x128xbf16>
    %cst_14 = arith.constant dense<0.000000e+00> : vector<128x128xf32>
    %18 = tpu.matmul %16, %17, %cst_14 {dimension_numbers = #tpu.dot_dimension_numbers<[1], [0], [0], [1], [0, 0, 1, 1], [], []>} : vector<128x256xbf16>, vector<256x128xbf16>, vector<128x128xf32> -> vector<128x128xf32>
    %c0_15 = arith.constant 0 : index
    %c0_16 = arith.constant 0 : index
    %19 = vector.load %arg7[%c0_15, %c0_16] : memref<1x128xf32, #tpu.memory_space<vmem>>, vector<1x128xf32>
    %20 = vector.broadcast %19 : vector<1x128xf32> to vector<128x128xf32>
    %21 = arith.addf %18, %20 : vector<128x128xf32>
    %22 = arith.mulf %21, %21 : vector<128x128xf32>
    %cst_17 = arith.constant dense<0.000000e+00> : vector<128xf32>
    %23 = vector.multi_reduction <add>, %22, %cst_17 [1] : vector<128x128xf32> to vector<128xf32>
    %24 = vector.shape_cast %23 : vector<128xf32> to vector<128x1xf32>
    %cst_18 = arith.constant 1.000000e-24 : f32
    %25 = vector.broadcast %cst_18 : f32 to vector<128x1xf32>
    %26 = arith.maximumf %24, %25 : vector<128x1xf32>
    %27 = math.rsqrt %26 : vector<128x1xf32>
    %28 = vector.broadcast %27 : vector<128x1xf32> to vector<128x128xf32>
    %29 = arith.mulf %21, %28 : vector<128x128xf32>
    %c0_19 = arith.constant 0 : index
    %c0_20 = arith.constant 0 : index
    %30 = vector.load %arg8[%c0_19, %c0_20] : memref<128x128xf32, #tpu.memory_space<vmem>>, vector<128x128xf32>
    tpu.vector_store %arg8[%c0_19, %c0_20], %29 {strides = array<i32>} : memref<128x128xf32, #tpu.memory_space<vmem>>, vector<128x128xf32>,
    return
  }
  func.func @transform_0(%arg0: i32) -> (i32, i32) {
    %c0_i32 = arith.constant 0 : i32
    %c0_i32_0 = arith.constant 0 : i32
    return %arg0, %c0_i32 : i32, i32
  }
  func.func @transform_1(%arg0: i32) -> (i32, i32) {
    %c0_i32 = arith.constant 0 : i32
    %c0_i32_0 = arith.constant 0 : i32
    %c0_i32_1 = arith.constant 0 : i32
    return %c0_i32, %c0_i32_0 : i32, i32
  }
  func.func @transform_2(%arg0: i32) -> (i32, i32) {
    %c0_i32 = arith.constant 0 : i32
    %c0_i32_0 = arith.constant 0 : i32
    %c0_i32_1 = arith.constant 0 : i32
    return %c0_i32, %c0_i32_0 : i32, i32
  }
  func.func @transform_3(%arg0: i32) -> (i32, i32) {
    %c0_i32 = arith.constant 0 : i32
    %c0_i32_0 = arith.constant 0 : i32
    %c0_i32_1 = arith.constant 0 : i32
    return %c0_i32, %c0_i32_0 : i32, i32
  }
  func.func @transform_4(%arg0: i32) -> (i32, i32) {
    %c0_i32 = arith.constant 0 : i32
    %c0_i32_0 = arith.constant 0 : i32
    %c0_i32_1 = arith.constant 0 : i32
    return %c0_i32, %c0_i32_0 : i32, i32
  }
  func.func @transform_5(%arg0: i32) -> (i32, i32) {
    %c0_i32 = arith.constant 0 : i32
    %c0_i32_0 = arith.constant 0 : i32
    %c0_i32_1 = arith.constant 0 : i32
    return %c0_i32, %c0_i32_0 : i32, i32
  }
  func.func @transform_6(%arg0: i32) -> (i32, i32) {
    %c0_i32 = arith.constant 0 : i32
    %c0_i32_0 = arith.constant 0 : i32
    %c0_i32_1 = arith.constant 0 : i32
    return %c0_i32, %c0_i32_0 : i32, i32
  }
  func.func @transform_7(%arg0: i32) -> (i32, i32) {
    %c0_i32 = arith.constant 0 : i32
    %c0_i32_0 = arith.constant 0 : i32
    return %arg0, %c0_i32 : i32, i32
  }
}

</mosaic_0001>

<llo_original>
// kernel: tpu_custom_call.1
$region0: #{tpu_custom_call.1}
  #allocation0 [shape = 'u32[]', space=smem, size = 0x4, offset = 0x4, fixed_abs, tag = 'smem constant byte address 0x4 - core index']
  #allocation1 [shape = 'u32[144,128]{1,0:T(1,128)}', space=vmem, size = 0x12000, scoped, tag = 'internal scratch']
  %s0 = inlined_call_operand.hbm [shape: bf16[256,256], index: 0, kind: input, shape index: {}]
  %s1 = inlined_call_operand.hbm [shape: bf16[256,512], index: 1, kind: input, shape index: {}]
  %s2 = inlined_call_operand.hbm [shape: f32[1,512], index: 2, kind: input, shape index: {}]
  %s3 = inlined_call_operand.hbm [shape: bf16[512,256], index: 3, kind: input, shape index: {}]
  %s4 = inlined_call_operand.hbm [shape: f32[1,256], index: 4, kind: input, shape index: {}]
  %s5 = inlined_call_operand.hbm [shape: bf16[256,128], index: 5, kind: input, shape index: {}]
  %s6 = inlined_call_operand.hbm [shape: f32[1,128], index: 6, kind: input, shape index: {}]
  %s7 = inlined_call_operand.hbm [shape: f32[256,128], index: 7, kind: output, shape index: {}]
  %s8 = sld [smem:[#allocation0]]
  $region89: #{tpu_custom_call.1} parent=0
    _
  %s10 = ssub.s32 1, %s8
  %s11 = scalar_select 0, %s10, %s8
  $region1: #{tpu_custom_call.1} parent=0
    #allocation2 [shape = 'u8[131072]{0}', space=vmem, size = 0x20000, scoped, tag = 'input window, operand 0']
    #allocation3 [shape = 's32[2]{0}', space=sflag, size = 0x8, scoped, tag = 'scoped memory for tpu_custom_call.1']
    #allocation4 [shape = 's32[2]{0}', space=sflag, size = 0x8, scoped, tag = 'scoped memory for tpu_custom_call.1']
    #allocation5 [shape = 'u8[262144]{0}', space=vmem, size = 0x40000, scoped, tag = 'input window, operand 1, single buffered']
    #allocation6 [shape = 's32[1]{0}', space=sflag, size = 0x4, scoped, tag = 'scoped memory for tpu_custom_call.1']
    #allocation7 [shape = 'u8[2048]{0}', space=vmem, size = 0x800, scoped, tag = 'input window, operand 2, single buffered']
    #allocation8 [shape = 'u8[262144]{0}', space=vmem, size = 0x40000, scoped, tag = 'input window, operand 3, single buffered']
    #allocation9 [shape = 's32[1]{0}', space=sflag, size = 0x4, scoped, tag = 'scoped memory for tpu_custom_call.1']
    #allocation10 [shape = 'u8[1024]{0}', space=vmem, size = 0x400, scoped, tag = 'input window, operand 4, single buffered']
    #allocation11 [shape = 'u8[65536]{0}', space=vmem, size = 0x10000, scoped, tag = 'input window, operand 5, single buffered']
    #allocation12 [shape = 's32[1]{0}', space=sflag, size = 0x4, scoped, tag = 'scoped memory for tpu_custom_call.1']
    #allocation13 [shape = 'u8[512]{0}', space=vmem, size = 0x400, scoped, tag = 'input window, operand 6, single buffered']
    #allocation14 [shape = 'u8[131072]{0}', space=vmem, size = 0x20000, scoped, tag = 'output window, operand 0']
    %12 = vsyncpa [#allocation3], 0
    %s13 = scalar_lea.sflag [#allocation3], 1
    %14 = vsyncpa %s13, 0
    %15 = vsyncpa [#allocation6], 0
    %16 = vsyncpa [#allocation9], 0
    %17 = vsyncpa [#allocation12], 0
    %18 = vsyncpa [#allocation4], 0
    %s19 = scalar_lea.sflag [#allocation4], 1
    %20 = vsyncpa %s19, 0
    loop: start=0, step=1, limit=4
    $region2: #{tpu_custom_call.1} parent=1 // loop_pre_header
      _
    $region3: #{tpu_custom_call.1} parent=1 // loop_header
      %s22 = sphi 0, %s26
      %p23 = scmp.ge.s32.totalorder %s22, 4
      %s32 = sphi 0, %s34
      %s35 = sphi 0, %s32
      %s36 = sphi 0, %s35
      %s52 = sphi 0, %s36
      %s56 = sphi 0, %s56
      %s58 = sphi 0, %s56
      %s59 = sphi 0, %s58
      %s73 = sphi 0, %s59
      %s77 = sphi 0, %s77
      %s79 = sphi 0, %s77
      %s80 = sphi 0, %s79
      %s94 = sphi 0, %s80
      %s98 = sphi 0, %s98
      %s100 = sphi 0, %s98
      %s101 = sphi 0, %s100
      %s115 = sphi 0, %s101
      %s119 = sphi 0, %s119
      %s121 = sphi 0, %s119
      %s122 = sphi 0, %s121
      %s136 = sphi 0, %s122
      %s140 = sphi 0, %s140
      %s142 = sphi 0, %s140
      %s143 = sphi 0, %s142
      %s157 = sphi 0, %s143
      %s161 = sphi 0, %s161
      %s163 = sphi 0, %s161
      %s164 = sphi 0, %s163
      %s178 = sphi 0, %s164
      %s184 = sphi 0, %s186
      %s187 = sphi 0, %s184
      %s188 = sphi 0, %s187
      %s204 = sphi 0, %s188
    $region4: #{tpu_custom_call.1} parent=1 // loop_header_branch
      %25 = sbr.rel (%p23) target = $region8
    $region5: #{tpu_custom_call.1} parent=1 // loop_body
      %s27 = ssub.s32 %s22, 1
      %s28 = ssub.s32 %s22, 2
      %s29 = sadd.s32 %s22, 1
      %s30 = ssub.s32 %s22, %s29
      %p31 = scmp.eq.s32.totalorder %s30, 0
      %s33 = sadd.s32 %s32, 1
      %s34 = scalar_select %p31, %s32, %s33
      %p37 = pneg %p31
      %p38 = scmp.eq.s32.totalorder %s22, 1
      %p39 = por %p37, %p38
      %p40 = scmp.ne.s32.totalorder %s32, %s35
      %p41 = scmp.eq.s32.totalorder %s22, 0
      %p42 = por %p40, %p41
      %p43 = scmp.ne.s32.totalorder %s32, %s35
      %p44 = scmp.eq.s32.totalorder %s27, 1
      %p45 = por %p43, %p44
      %p46 = scmp.ne.s32.totalorder %s35, %s36
      %p47 = scmp.eq.s32.totalorder %s27, 0
      %p48 = por %p46, %p47
      %p49 = scmp.ne.s32.totalorder %s35, %s36
      %p50 = scmp.eq.s32.totalorder %s28, 1
      %p51 = por %p49, %p50
      %p53 = scmp.ne.s32.totalorder %s36, %s52
      %p54 = scmp.eq.s32.totalorder %s28, 0
      %p55 = por %p53, %p54
      %s57 = sadd.s32 %s56, 1
      %p60 = scmp.eq.s32.totalorder %s22, 1
      %p61 = scmp.ne.s32.totalorder %s56, %s58
      %p62 = scmp.eq.s32.totalorder %s22, 0
      %p63 = por %p61, %p62
      %p64 = scmp.ne.s32.totalorder %s56, %s58
      %p65 = scmp.eq.s32.totalorder %s27, 1
      %p66 = por %p64, %p65
      %p67 = scmp.ne.s32.totalorder %s58, %s59
      %p68 = scmp.eq.s32.totalorder %s27, 0
      %p69 = por %p67, %p68
      %p70 = scmp.ne.s32.totalorder %s58, %s59
      %p71 = scmp.eq.s32.totalorder %s28, 1
      %p72 = por %p70, %p71
      %p74 = scmp.ne.s32.totalorder %s59, %s73
      %p75 = scmp.eq.s32.totalorder %s28, 0
      %p76 = por %p74, %p75
      %s78 = sadd.s32 %s77, 1
      %p81 = scmp.eq.s32.totalorder %s22, 1
      %p82 = scmp.ne.s32.totalorder %s77, %s79
      %p83 = scmp.eq.s32.totalorder %s22, 0
      %p84 = por %p82, %p83
      %p85 = scmp.ne.s32.totalorder %s77, %s79
      %p86 = scmp.eq.s32.totalorder %s27, 1
      %p87 = por %p85, %p86
      %p88 = scmp.ne.s32.totalorder %s79, %s80
      %p89 = scmp.eq.s32.totalorder %s27, 0
      %p90 = por %p88, %p89
      %p91 = scmp.ne.s32.totalorder %s79, %s80
      %p92 = scmp.eq.s32.totalorder %s28, 1
      %p93 = por %p91, %p92
      %p95 = scmp.ne.s32.totalorder %s80, %s94
      %p96 = scmp.eq.s32.totalorder %s28, 0
      %p97 = por %p95, %p96
      %s99 = sadd.s32 %s98, 1
      %p102 = scmp.eq.s32.totalorder %s22, 1
      %p103 = scmp.ne.s32.totalorder %s98, %s100
      %p104 = scmp.eq.s32.totalorder %s22, 0
      %p105 = por %p103, %p104
      %p106 = scmp.ne.s32.totalorder %s98, %s100
      %p107 = scmp.eq.s32.totalorder %s27, 1
      %p108 = por %p106, %p107
      %p109 = scmp.ne.s32.totalorder %s100, %s101
      %p110 = scmp.eq.s32.totalorder %s27, 0
      %p111 = por %p109, %p110
      %p112 = scmp.ne.s32.totalorder %s100, %s101
      %p113 = scmp.eq.s32.totalorder %s28, 1
      %p114 = por %p112, %p113
      %p116 = scmp.ne.s32.totalorder %s101, %s115
      %p117 = scmp.eq.s32.totalorder %s28, 0
      %p118 = por %p116, %p117
      %s120 = sadd.s32 %s119, 1
      %p123 = scmp.eq.s32.totalorder %s22, 1
      %p124 = scmp.ne.s32.totalorder %s119, %s121
      %p125 = scmp.eq.s32.totalorder %s22, 0
      %p126 = por %p124, %p125
      %p127 = scmp.ne.s32.totalorder %s119, %s121
      %p128 = scmp.eq.s32.totalorder %s27, 1
      %p129 = por %p127, %p128
      %p130 = scmp.ne.s32.totalorder %s121, %s122
      %p131 = scmp.eq.s32.totalorder %s27, 0
      %p132 = por %p130, %p131
      %p133 = scmp.ne.s32.totalorder %s121, %s122
      %p134 = scmp.eq.s32.totalorder %s28, 1
      %p135 = por %p133, %p134
      %p137 = scmp.ne.s32.totalorder %s122, %s136
      %p138 = scmp.eq.s32.totalorder %s28, 0
      %p139 = por %p137, %p138
      %s141 = sadd.s32 %s140, 1
      %p144 = scmp.eq.s32.totalorder %s22, 1
      %p145 = scmp.ne.s32.totalorder %s140, %s142
      %p146 = scmp.eq.s32.totalorder %s22, 0
      %p147 = por %p145, %p146
      %p148 = scmp.ne.s32.totalorder %s140, %s142
      %p149 = scmp.eq.s32.totalorder %s27, 1
      %p150 = por %p148, %p149
      %p151 = scmp.ne.s32.totalorder %s142, %s143
      %p152 = scmp.eq.s32.totalorder %s27, 0
      %p153 = por %p151, %p152
      %p154 = scmp.ne.s32.totalorder %s142, %s143
      %p155 = scmp.eq.s32.totalorder %s28, 1
      %p156 = por %p154, %p155
      %p158 = scmp.ne.s32.totalorder %s143, %s157
      %p159 = scmp.eq.s32.totalorder %s28, 0
      %p160 = por %p158, %p159
      %s162 = sadd.s32 %s161, 1
      %p165 = scmp.eq.s32.totalorder %s22, 1
      %p166 = scmp.ne.s32.totalorder %s161, %s163
      %p167 = scmp.eq.s32.totalorder %s22, 0
      %p168 = por %p166, %p167
      %p169 = scmp.ne.s32.totalorder %s161, %s163
      %p170 = scmp.eq.s32.totalorder %s27, 1
      %p171 = por %p169, %p170
      %p172 = scmp.ne.s32.totalorder %s163, %s164
      %p173 = scmp.eq.s32.totalorder %s27, 0
      %p174 = por %p172, %p173
      %p175 = scmp.ne.s32.totalorder %s163, %s164
      %p176 = scmp.eq.s32.totalorder %s28, 1
      %p177 = por %p175, %p176
      %p179 = scmp.ne.s32.totalorder %s164, %s178
      %p180 = scmp.eq.s32.totalorder %s28, 0
      %p181 = por %p179, %p180
      %s182 = ssub.s32 %s22, %s29
      %p183 = scmp.eq.s32.totalorder %s182, 0
      %s185 = sadd.s32 %s184, 1
      %s186 = scalar_select %p183, %s184, %s185
      %p189 = pneg %p183
      %p190 = scmp.eq.s32.totalorder %s22, 1
      %p191 = por %p189, %p190
      %p192 = scmp.ne.s32.totalorder %s184, %s187
      %p193 = scmp.eq.s32.totalorder %s22, 0
      %p194 = por %p192, %p193
      %p195 = scmp.ne.s32.totalorder %s184, %s187
      %p196 = scmp.eq.s32.totalorder %s27, 1
      %p197 = por %p195, %p196
      %p198 = scmp.ne.s32.totalorder %s187, %s188
      %p199 = scmp.eq.s32.totalorder %s27, 0
      %p200 = por %p198, %p199
      %p201 = scmp.ne.s32.totalorder %s187, %s188
      %p202 = scmp.eq.s32.totalorder %s28, 1
      %p203 = por %p201, %p202
      %p205 = scmp.ne.s32.totalorder %s188, %s204
      %p206 = scmp.eq.s32.totalorder %s28, 0
      %p207 = por %p205, %p206
      %p208 = scmp.le.s32.totalorder 1, %s22
      %p209 = scmp.lt.s32.totalorder %s22, 3
      %p210 = pnand %p208, %p209
      %p211 = pneg %p210
      // Predicated region
      $region9: #{tpu_custom_call.1} parent=5 // pred_check
        _
      $region10: #{tpu_custom_call.1} parent=5 // pred_check_branch
        %213 = sbr.rel (%p210) target = $region12
      $region11: #{tpu_custom_call.1} parent=5 // pred_region
        %s214 = ssub.s32 %s22, 1
        // Predicated region
        $region13: #{tpu_custom_call.1} parent=11 // pred_check
          %p215 = pneg %p69
        $region14: #{tpu_custom_call.1} parent=11 // pred_check_branch
          %217 = sbr.rel (%p215) target = $region16
        $region15: #{tpu_custom_call.1} parent=11 // pred_region
          %s219 = ssub.s32 8192, 8192
          %220 = vsyncadd [#allocation6], %s219
          %s221 = sshll.u32 [#allocation5], 4
          %s222 = int_to_ptr.vmem [resolvable:$true] %s221
          %227 = dma.hbm_to_vmem [thread:$0]  %s1, 8192, %s222, [#allocation6], 256, 256, 16
        $region16: #{tpu_custom_call.1} parent=11 // pred_fallthru
          _
        // Predicated region
        $region17: #{tpu_custom_call.1} parent=11 // pred_check
          %p228 = pneg %p90
        $region18: #{tpu_custom_call.1} parent=11 // pred_check_branch
          %230 = sbr.rel (%p228) target = $region20
        $region19: #{tpu_custom_call.1} parent=11 // pred_region
          %s232 = ssub.s32 64, 64
          %233 = vsyncadd [#allocation6], %s232
          %s235 = sshll.u32 [#allocation7], 4
          %s236 = int_to_ptr.vmem [resolvable:$true] %s235
          %238 = dma.hbm_to_vmem [thread:$0]  %s2, 64, %s236, [#allocation6]
        $region20: #{tpu_custom_call.1} parent=11 // pred_fallthru
          _
        // Predicated region
        $region21: #{tpu_custom_call.1} parent=11 // pred_check
          %p239 = pneg %p111
        $region22: #{tpu_custom_call.1} parent=11 // pred_check_branch
          %241 = sbr.rel (%p239) target = $region24
        $region23: #{tpu_custom_call.1} parent=11 // pred_region
          %s243 = ssub.s32 8192, 8192
          %244 = vsyncadd [#allocation9], %s243
          %s245 = sshll.u32 [#allocation8], 4
          %s246 = int_to_ptr.vmem [resolvable:$true] %s245
          %251 = dma.hbm_to_vmem [thread:$0]  %s3, 8192, %s246, [#allocation9], 128, 128, 8
        $region24: #{tpu_custom_call.1} parent=11 // pred_fallthru
          _
        // Predicated region
        $region25: #{tpu_custom_call.1} parent=11 // pred_check
          %p252 = pneg %p132
        $region26: #{tpu_custom_call.1} parent=11 // pred_check_branch
          %254 = sbr.rel (%p252) target = $region28
        $region27: #{tpu_custom_call.1} parent=11 // pred_region
          %s256 = ssub.s32 32, 32
          %257 = vsyncadd [#allocation9], %s256
          %s259 = sshll.u32 [#allocation10], 4
          %s260 = int_to_ptr.vmem [resolvable:$true] %s259
          %262 = dma.hbm_to_vmem [thread:$0]  %s4, 32, %s260, [#allocation9]
        $region28: #{tpu_custom_call.1} parent=11 // pred_fallthru
          _
        // Predicated region
        $region29: #{tpu_custom_call.1} parent=11 // pred_check
          %p263 = pneg %p153
        $region30: #{tpu_custom_call.1} parent=11 // pred_check_branch
          %265 = sbr.rel (%p263) target = $region32
        $region31: #{tpu_custom_call.1} parent=11 // pred_region
          %s267 = ssub.s32 2048, 2048
          %268 = vsyncadd [#allocation12], %s267
          %s269 = sshll.u32 [#allocation11], 4
          %s270 = int_to_ptr.vmem [resolvable:$true] %s269
          %275 = dma.hbm_to_vmem [thread:$0]  %s5, 2048, %s270, [#allocation12], 64, 64, 4
        $region32: #{tpu_custom_call.1} parent=11 // pred_fallthru
          _
        // Predicated region
        $region33: #{tpu_custom_call.1} parent=11 // pred_check
          %p276 = pneg %p174
        $region34: #{tpu_custom_call.1} parent=11 // pred_check_branch
          %278 = sbr.rel (%p276) target = $region36
        $region35: #{tpu_custom_call.1} parent=11 // pred_region
          %s280 = ssub.s32 16, 16
          %281 = vsyncadd [#allocation12], %s280
          %s283 = sshll.u32 [#allocation13], 4
          %s284 = int_to_ptr.vmem [resolvable:$true] %s283
          %286 = dma.hbm_to_vmem [thread:$0]  %s6, 16, %s284, [#allocation12]
        $region36: #{tpu_custom_call.1} parent=11 // pred_fallthru
          _
      $region12: #{tpu_custom_call.1} parent=5 // pred_fallthru
        _
      %p287 = scmp.lt.s32.totalorder %s22, 2
      // Predicated region
      $region37: #{tpu_custom_call.1} parent=5 // pred_check
        %p288 = pneg %p287
      $region38: #{tpu_custom_call.1} parent=5 // pred_check_branch
        %290 = sbr.rel (%p288) target = $region40
      $region39: #{tpu_custom_call.1} parent=5 // pred_region
        // Predicated region
        $region41: #{tpu_custom_call.1} parent=39 // pred_check
          %p291 = pneg %p42
        $region42: #{tpu_custom_call.1} parent=39 // pred_check_branch
          %293 = sbr.rel (%p291) target = $region44
        $region43: #{tpu_custom_call.1} parent=39 // pred_region
          %s294 = sand.u32 %s32, 1
          %s295 = scalar_lea.sflag [#allocation3], %s294
          %s296 = sand.u32 %s32, 1
          %s297 = smul.addr %s296, 128
          %s298 = scalar_lea.vmem [#allocation2], %s297
          %s299 = smul.u32 16, %s22
          %s301 = ssub.s32 2048, 2048
          %302 = vsyncadd %s295, %s301
          %s303 = smul.addr %s299, 2
          %s304 = smul.addr %s303, 64
          %s305 = scalar_lea.hbm %s0, %s304
          %s306 = sshll.u32 %s298, 4
          %s307 = int_to_ptr.vmem [resolvable:$true] %s306
          %312 = dma.hbm_to_vmem [thread:$0]  %s305, 2048, %s307, %s295, 128, 128, 8
        $region44: #{tpu_custom_call.1} parent=39 // pred_fallthru
          _
      $region40: #{tpu_custom_call.1} parent=5 // pred_fallthru
        _
      %p313 = scmp.le.s32.totalorder 1, %s22
      %p314 = scmp.lt.s32.totalorder %s22, 3
      %p315 = pnand %p313, %p314
      %p316 = pneg %p315
      // Predicated region
      $region45: #{tpu_custom_call.1} parent=5 // pred_check
        _
      $region46: #{tpu_custom_call.1} parent=5 // pred_check_branch
        %318 = sbr.rel (%p315) target = $region48
      $region47: #{tpu_custom_call.1} parent=5 // pred_region
        %s319 = ssub.s32 %s22, 1
        %s320 = sand.u32 %s35, 1
        %s321 = scalar_lea.sflag [#allocation3], %s320
        %s322 = sand.u32 %s35, 1
        %s323 = smul.addr %s322, 128
        %s324 = scalar_lea.vmem [#allocation2], %s323
        // Predicated region
        $region49: #{tpu_custom_call.1} parent=47 // pred_check
          %p325 = pneg %p48
        $region50: #{tpu_custom_call.1} parent=47 // pred_check_branch
          %327 = sbr.rel (%p325) target = $region52
        $region51: #{tpu_custom_call.1} parent=47 // pred_region
          %328 = dma.done %s321, 2048
        $region52: #{tpu_custom_call.1} parent=47 // pred_fallthru
          _
        // Predicated region
        $region53: #{tpu_custom_call.1} parent=47 // pred_check
          %p329 = pneg %p69
        $region54: #{tpu_custom_call.1} parent=47 // pred_check_branch
          %331 = sbr.rel (%p329) target = $region56
        $region55: #{tpu_custom_call.1} parent=47 // pred_region
          %332 = dma.done [#allocation6], 8192
        $region56: #{tpu_custom_call.1} parent=47 // pred_fallthru
          _
        // Predicated region
        $region57: #{tpu_custom_call.1} parent=47 // pred_check
          %p333 = pneg %p90
        $region58: #{tpu_custom_call.1} parent=47 // pred_check_branch
          %335 = sbr.rel (%p333) target = $region60
        $region59: #{tpu_custom_call.1} parent=47 // pred_region
          %336 = dma.done [#allocation6], 64
        $region60: #{tpu_custom_call.1} parent=47 // pred_fallthru
          _
        // Predicated region
        $region61: #{tpu_custom_call.1} parent=47 // pred_check
          %p337 = pneg %p111
        $region62: #{tpu_custom_call.1} parent=47 // pred_check_branch
          %339 = sbr.rel (%p337) target = $region64
        $region63: #{tpu_custom_call.1} parent=47 // pred_region
          %340 = dma.done [#allocation9], 8192
        $region64: #{tpu_custom_call.1} parent=47 // pred_fallthru
          _
        // Predicated region
        $region65: #{tpu_custom_call.1} parent=47 // pred_check
          %p341 = pneg %p132
        $region66: #{tpu_custom_call.1} parent=47 // pred_check_branch
          %343 = sbr.rel (%p341) target = $region68
        $region67: #{tpu_custom_call.1} parent=47 // pred_region
          %344 = dma.done [#allocation9], 32
        $region68: #{tpu_custom_call.1} parent=47 // pred_fallthru
          _
        // Predicated region
        $region69: #{tpu_custom_call.1} parent=47 // pred_check
          %p345 = pneg %p153
        $region70: #{tpu_custom_call.1} parent=47 // pred_check_branch
          %347 = sbr.rel (%p345) target = $region72
        $region71: #{tpu_custom_call.1} parent=47 // pred_region
          %348 = dma.done [#allocation12], 2048
        $region72: #{tpu_custom_call.1} parent=47 // pred_fallthru
          _
        // Predicated region
        $region73: #{tpu_custom_call.1} parent=47 // pred_check
          %p349 = pneg %p174
        $region74: #{tpu_custom_call.1} parent=47 // pred_check_branch
          %351 = sbr.rel (%p349) target = $region76
        $region75: #{tpu_custom_call.1} parent=47 // pred_region
          %352 = dma.done [#allocation12], 16
        $region76: #{tpu_custom_call.1} parent=47 // pred_fallthru
          _
        %s353 = sand.u32 %s35, 1
        %s354 = scalar_lea.sflag [#allocation3], %s353
        %s355 = sand.u32 %s35, 1
        %s356 = smul.addr %s355, 128
        %s357 = scalar_lea.vmem [#allocation2], %s356
        %p358 = pneg %p48
        %p359 = pneg %p45
        %p360 = pneg %p69
        %p361 = pneg %p66
        %p362 = pneg %p90
        %p363 = pneg %p87
        %p364 = pneg %p111
        %p365 = pneg %p108
        %p366 = pneg %p132
        %p367 = pneg %p129
        %p368 = pneg %p153
        %p369 = pneg %p150
        %p370 = pneg %p174
        %p371 = pneg %p171
        %p372 = pneg %p200
        %p373 = pneg %p197
        %s374 = sand.u32 %s187, 1
        %s375 = scalar_lea.sflag [#allocation4], %s374
        %s376 = sand.u32 %s187, 1
        %s377 = smul.addr %s376, 128
        %s378 = scalar_lea.vmem [#allocation14], %s377
        %s379 = smul.u32 16, %s27
        %s380 = smul.u32 16, %s27
        %v382 = vld [vmem:[%s324] sm:$0xff]
        %v383 = vld [vmem:[%s324 + $0x8] sm:$0xff]
        %v384 = vld [vmem:[%s324 + $0x10] sm:$0xff]
        %v385 = vld [vmem:[%s324 + $0x18] sm:$0xff]
        %v386 = vld [vmem:[%s324 + $0x20] sm:$0xff]
        %v387 = vld [vmem:[%s324 + $0x28] sm:$0xff]
        %v388 = vld [vmem:[%s324 + $0x30] sm:$0xff]
        %v389 = vld [vmem:[%s324 + $0x38] sm:$0xff]
        %v390 = vld [vmem:[%s324 + $0x40] sm:$0xff]
        %v391 = vld [vmem:[%s324 + $0x48] sm:$0xff]
        %v392 = vld [vmem:[%s324 + $0x50] sm:$0xff]
        %v393 = vld [vmem:[%s324 + $0x58] sm:$0xff]
        %v394 = vld [vmem:[%s324 + $0x60] sm:$0xff]
        %v395 = vld [vmem:[%s324 + $0x68] sm:$0xff]
        %v396 = vld [vmem:[%s324 + $0x70] sm:$0xff]
        %v397 = vld [vmem:[%s324 + $0x78] sm:$0xff]
        %v398 = vld [vmem:[#allocation5] sm:$0xff]
        %v399 = vld [vmem:[#allocation5 + $0x8] sm:$0xff]
        %v400 = vld [vmem:[#allocation5 + $0x10] sm:$0xff]
        %v401 = vld [vmem:[#allocation5 + $0x18] sm:$0xff]
        %v402 = vld [vmem:[#allocation5 + $0x20] sm:$0xff]
        %v403 = vld [vmem:[#allocation5 + $0x28] sm:$0xff]
        %v404 = vld [vmem:[#allocation5 + $0x30] sm:$0xff]
        %v405 = vld [vmem:[#allocation5 + $0x38] sm:$0xff]
        %v406 = vld [vmem:[#allocation5 + $0x40] sm:$0xff]
        %v407 = vld [vmem:[#allocation5 + $0x48] sm:$0xff]
        %v408 = vld [vmem:[#allocation5 + $0x50] sm:$0xff]
        %v409 = vld [vmem:[#allocation5 + $0x58] sm:$0xff]
        %v410 = vld [vmem:[#allocation5 + $0x60] sm:$0xff]
        %v411 = vld [vmem:[#allocation5 + $0x68] sm:$0xff]
        %v412 = vld [vmem:[#allocation5 + $0x70] sm:$0xff]
        %v413 = vld [vmem:[#allocation5 + $0x78] sm:$0xff]
        %v414 = vld [vmem:[#allocation5 + $0x80] sm:$0xff]
        %v415 = vld [vmem:[#allocation5 + $0x88] sm:$0xff]
        %v416 = vld [vmem:[#allocation5 + $0x90] sm:$0xff]
        %v417 = vld [vmem:[#allocation5 + $0x98] sm:$0xff]
        %v418 = vld [vmem:[#allocation5 + $0xa0] sm:$0xff]
        %v419 = vld [vmem:[#allocation5 + $0xa8] sm:$0xff]
        %v420 = vld [vmem:[#allocation5 + $0xb0] sm:$0xff]
        %v421 = vld [vmem:[#allocation5 + $0xb8] sm:$0xff]
        %v422 = vld [vmem:[#allocation5 + $0xc0] sm:$0xff]
        %v423 = vld [vmem:[#allocation5 + $0xc8] sm:$0xff]
        %v424 = vld [vmem:[#allocation5 + $0xd0] sm:$0xff]
        %v425 = vld [vmem:[#allocation5 + $0xd8] sm:$0xff]
        %v426 = vld [vmem:[#allocation5 + $0xe0] sm:$0xff]
        %v427 = vld [vmem:[#allocation5 + $0xe8] sm:$0xff]
        %v428 = vld [vmem:[#allocation5 + $0xf0] sm:$0xff]
        %v429 = vld [vmem:[#allocation5 + $0xf8] sm:$0xff]
        %v430 = vld [vmem:[#allocation5 + $0x100] sm:$0xff]
        %v431 = vld [vmem:[#allocation5 + $0x108] sm:$0xff]
        %v432 = vld [vmem:[#allocation5 + $0x110] sm:$0xff]
        %v433 = vld [vmem:[#allocation5 + $0x118] sm:$0xff]
        %v434 = vld [vmem:[#allocation5 + $0x120] sm:$0xff]
        %v435 = vld [vmem:[#allocation5 + $0x128] sm:$0xff]
        %v436 = vld [vmem:[#allocation5 + $0x130] sm:$0xff]
        %v437 = vld [vmem:[#allocation5 + $0x138] sm:$0xff]
        %v438 = vld [vmem:[#allocation5 + $0x140] sm:$0xff]
        %v439 = vld [vmem:[#allocation5 + $0x148] sm:$0xff]
        %v440 = vld [vmem:[#allocation5 + $0x150] sm:$0xff]
        %v441 = vld [vmem:[#allocation5 + $0x158] sm:$0xff]
        %v442 = vld [vmem:[#allocation5 + $0x160] sm:$0xff]
        %v443 = vld [vmem:[#allocation5 + $0x168] sm:$0xff]
        %v444 = vld [vmem:[#allocation5 + $0x170] sm:$0xff]
        %v445 = vld [vmem:[#allocation5 + $0x178] sm:$0xff]
        %v446 = vld [vmem:[#allocation5 + $0x180] sm:$0xff]
        %v447 = vld [vmem:[#allocation5 + $0x188] sm:$0xff]
        %v448 = vld [vmem:[#allocation5 + $0x190] sm:$0xff]
        %v449 = vld [vmem:[#allocation5 + $0x198] sm:$0xff]
        %v450 = vld [vmem:[#allocation5 + $0x1a0] sm:$0xff]
        %v451 = vld [vmem:[#allocation5 + $0x1a8] sm:$0xff]
        %v452 = vld [vmem:[#allocation5 + $0x1b0] sm:$0xff]
        %v453 = vld [vmem:[#allocation5 + $0x1b8] sm:$0xff]
        %v454 = vld [vmem:[#allocation5 + $0x1c0] sm:$0xff]
        %v455 = vld [vmem:[#allocation5 + $0x1c8] sm:$0xff]
        %v456 = vld [vmem:[#allocation5 + $0x1d0] sm:$0xff]
        %v457 = vld [vmem:[#allocation5 + $0x1d8] sm:$0xff]
        %v458 = vld [vmem:[#allocation5 + $0x1e0] sm:$0xff]
        %v459 = vld [vmem:[#allocation5 + $0x1e8] sm:$0xff]
        %v460 = vld [vmem:[#allocation5 + $0x1f0] sm:$0xff]
        %v461 = vld [vmem:[#allocation5 + $0x1f8] sm:$0xff]
        %v462 = vld [vmem:[#allocation7] sm:$0xf]
        %v464 = vlaneseq
        %v465 = vshrl.u32 %v464, 7
        %v466 = vsub.s32 0, %v465
        %v467 = vrot.slane %v462, %v466
        %v468 = vlaneseq
        %v469 = vshrl.u32 %v468, 7
        %v470 = vsub.s32 1, %v469
        %v471 = vrot.slane %v462, %v470
        %v472 = vlaneseq
        %v473 = vshrl.u32 %v472, 7
        %v474 = vsub.s32 2, %v473
        %v475 = vrot.slane %v462, %v474
        %v476 = vlaneseq
        %v477 = vshrl.u32 %v476, 7
        %v478 = vsub.s32 3, %v477
        %v479 = vrot.slane %v462, %v478
        %v500 = vunpack.c.l.b16 %v382
        %v501 = vunpack.c.h.b16 %v382
        %v502 = vunpack.c.l.b16 %v383
        %v503 = vunpack.c.h.b16 %v383
        %v504 = vunpack.c.l.b16 %v384
        %v505 = vunpack.c.h.b16 %v384
        %v506 = vunpack.c.l.b16 %v385
        %v507 = vunpack.c.h.b16 %v385
        %v508 = vunpack.c.l.b16 %v386
        %v509 = vunpack.c.h.b16 %v386
        %v510 = vunpack.c.l.b16 %v387
        %v511 = vunpack.c.h.b16 %v387
        %v512 = vunpack.c.l.b16 %v388
        %v513 = vunpack.c.h.b16 %v388
        %v514 = vunpack.c.l.b16 %v389
        %v515 = vunpack.c.h.b16 %v389
        %v516 = vunpack.c.l.b16 %v390
        %v517 = vunpack.c.h.b16 %v390
        %v518 = vunpack.c.l.b16 %v391
        %v519 = vunpack.c.h.b16 %v391
        %v520 = vunpack.c.l.b16 %v392
        %v521 = vunpack.c.h.b16 %v392
        %v522 = vunpack.c.l.b16 %v393
        %v523 = vunpack.c.h.b16 %v393
        %v524 = vunpack.c.l.b16 %v394
        %v525 = vunpack.c.h.b16 %v394
        %v526 = vunpack.c.l.b16 %v395
        %v527 = vunpack.c.h.b16 %v395
        %v528 = vunpack.c.l.b16 %v396
        %v529 = vunpack.c.h.b16 %v396
        %v530 = vunpack.c.l.b16 %v397
        %v531 = vunpack.c.h.b16 %v397
        %v532 = vpack.c.b16 %v502, %v500
        %v533 = vpack.c.b16 %v503, %v501
        %v534 = vpack.c.b16 %v506, %v504
        %v535 = vpack.c.b16 %v507, %v505
        %v536 = vpack.c.b16 %v510, %v508
        %v537 = vpack.c.b16 %v511, %v509
        %v538 = vpack.c.b16 %v514, %v512
        %v539 = vpack.c.b16 %v515, %v513
        %v540 = vpack.c.b16 %v518, %v516
        %v541 = vpack.c.b16 %v519, %v517
        %v542 = vpack.c.b16 %v522, %v520
        %v543 = vpack.c.b16 %v523, %v521
        %v544 = vpack.c.b16 %v526, %v524
        %v545 = vpack.c.b16 %v527, %v525
        %v546 = vpack.c.b16 %v530, %v528
        %v547 = vpack.c.b16 %v531, %v529
        %v628 = vunpack.c.l.b16 %v398
        %v629 = vunpack.c.h.b16 %v398
        %v630 = vunpack.c.l.b16 %v399
        %v631 = vunpack.c.h.b16 %v399
        %v632 = vunpack.c.l.b16 %v400
        %v633 = vunpack.c.h.b16 %v400
        %v634 = vunpack.c.l.b16 %v401
        %v635 = vunpack.c.h.b16 %v401
        %v636 = vunpack.c.l.b16 %v402
        %v637 = vunpack.c.h.b16 %v402
        %v638 = vunpack.c.l.b16 %v403
        %v639 = vunpack.c.h.b16 %v403
        %v640 = vunpack.c.l.b16 %v404
        %v641 = vunpack.c.h.b16 %v404
        %v642 = vunpack.c.l.b16 %v405
        %v643 = vunpack.c.h.b16 %v405
        %v644 = vunpack.c.l.b16 %v406
        %v645 = vunpack.c.h.b16 %v406
        %v646 = vunpack.c.l.b16 %v407
        %v647 = vunpack.c.h.b16 %v407
        %v648 = vunpack.c.l.b16 %v408
        %v649 = vunpack.c.h.b16 %v408
        %v650 = vunpack.c.l.b16 %v409
        %v651 = vunpack.c.h.b16 %v409
        %v652 = vunpack.c.l.b16 %v410
        %v653 = vunpack.c.h.b16 %v410
        %v654 = vunpack.c.l.b16 %v411
        %v655 = vunpack.c.h.b16 %v411
        %v656 = vunpack.c.l.b16 %v412
        %v657 = vunpack.c.h.b16 %v412
        %v658 = vunpack.c.l.b16 %v413
        %v659 = vunpack.c.h.b16 %v413
        %v660 = vunpack.c.l.b16 %v414
        %v661 = vunpack.c.h.b16 %v414
        %v662 = vunpack.c.l.b16 %v415
        %v663 = vunpack.c.h.b16 %v415
        %v664 = vunpack.c.l.b16 %v416
        %v665 = vunpack.c.h.b16 %v416
        %v666 = vunpack.c.l.b16 %v417
        %v667 = vunpack.c.h.b16 %v417
        %v668 = vunpack.c.l.b16 %v418
        %v669 = vunpack.c.h.b16 %v418
        %v670 = vunpack.c.l.b16 %v419
        %v671 = vunpack.c.h.b16 %v419
        %v672 = vunpack.c.l.b16 %v420
        %v673 = vunpack.c.h.b16 %v420
        %v674 = vunpack.c.l.b16 %v421
        %v675 = vunpack.c.h.b16 %v421
        %v676 = vunpack.c.l.b16 %v422
        %v677 = vunpack.c.h.b16 %v422
        %v678 = vunpack.c.l.b16 %v423
        %v679 = vunpack.c.h.b16 %v423
        %v680 = vunpack.c.l.b16 %v424
        %v681 = vunpack.c.h.b16 %v424
        %v682 = vunpack.c.l.b16 %v425
        %v683 = vunpack.c.h.b16 %v425
        %v684 = vunpack.c.l.b16 %v426
        %v685 = vunpack.c.h.b16 %v426
        %v686 = vunpack.c.l.b16 %v427
        %v687 = vunpack.c.h.b16 %v427
        %v688 = vunpack.c.l.b16 %v428
        %v689 = vunpack.c.h.b16 %v428
        %v690 = vunpack.c.l.b16 %v429
        %v691 = vunpack.c.h.b16 %v429
        %v692 = vunpack.c.l.b16 %v430
        %v693 = vunpack.c.h.b16 %v430
        %v694 = vunpack.c.l.b16 %v431
        %v695 = vunpack.c.h.b16 %v431
        %v696 = vunpack.c.l.b16 %v432
        %v697 = vunpack.c.h.b16 %v432
        %v698 = vunpack.c.l.b16 %v433
        %v699 = vunpack.c.h.b16 %v433
        %v700 = vunpack.c.l.b16 %v434
        %v701 = vunpack.c.h.b16 %v434
        %v702 = vunpack.c.l.b16 %v435
        %v703 = vunpack.c.h.b16 %v435
        %v704 = vunpack.c.l.b16 %v436
        %v705 = vunpack.c.h.b16 %v436
        %v706 = vunpack.c.l.b16 %v437
        %v707 = vunpack.c.h.b16 %v437
        %v708 = vunpack.c.l.b16 %v438
        %v709 = vunpack.c.h.b16 %v438
        %v710 = vunpack.c.l.b16 %v439
        %v711 = vunpack.c.h.b16 %v439
        %v712 = vunpack.c.l.b16 %v440
        %v713 = vunpack.c.h.b16 %v440
        %v714 = vunpack.c.l.b16 %v441
        %v715 = vunpack.c.h.b16 %v441
        %v716 = vunpack.c.l.b16 %v442
        %v717 = vunpack.c.h.b16 %v442
        %v718 = vunpack.c.l.b16 %v443
        %v719 = vunpack.c.h.b16 %v443
        %v720 = vunpack.c.l.b16 %v444
        %v721 = vunpack.c.h.b16 %v444
        %v722 = vunpack.c.l.b16 %v445
        %v723 = vunpack.c.h.b16 %v445
        %v724 = vunpack.c.l.b16 %v446
        %v725 = vunpack.c.h.b16 %v446
        %v726 = vunpack.c.l.b16 %v447
        %v727 = vunpack.c.h.b16 %v447
        %v728 = vunpack.c.l.b16 %v448
        %v729 = vunpack.c.h.b16 %v448
        %v730 = vunpack.c.l.b16 %v449
        %v731 = vunpack.c.h.b16 %v449
        %v732 = vunpack.c.l.b16 %v450
        %v733 = vunpack.c.h.b16 %v450
        %v734 = vunpack.c.l.b16 %v451
        %v735 = vunpack.c.h.b16 %v451
        %v736 = vunpack.c.l.b16 %v452
        %v737 = vunpack.c.h.b16 %v452
        %v738 = vunpack.c.l.b16 %v453
        %v739 = vunpack.c.h.b16 %v453
        %v740 = vunpack.c.l.b16 %v454
        %v741 = vunpack.c.h.b16 %v454
        %v742 = vunpack.c.l.b16 %v455
        %v743 = vunpack.c.h.b16 %v455
        %v744 = vunpack.c.l.b16 %v456
        %v745 = vunpack.c.h.b16 %v456
        %v746 = vunpack.c.l.b16 %v457
        %v747 = vunpack.c.h.b16 %v457
        %v748 = vunpack.c.l.b16 %v458
        %v749 = vunpack.c.h.b16 %v458
        %v750 = vunpack.c.l.b16 %v459
        %v751 = vunpack.c.h.b16 %v459
        %v752 = vunpack.c.l.b16 %v460
        %v753 = vunpack.c.h.b16 %v460
        %v754 = vunpack.c.l.b16 %v461
        %v755 = vunpack.c.h.b16 %v461
        %v756 = vpack.c.b16 %v632, %v628
        %v757 = vpack.c.b16 %v633, %v629
        %v758 = vpack.c.b16 %v634, %v630
        %v759 = vpack.c.b16 %v635, %v631
        %v760 = vpack.c.b16 %v640, %v636
        %v761 = vpack.c.b16 %v641, %v637
        %v762 = vpack.c.b16 %v642, %v638
        %v763 = vpack.c.b16 %v643, %v639
        %v764 = vpack.c.b16 %v648, %v644
        %v765 = vpack.c.b16 %v649, %v645
        %v766 = vpack.c.b16 %v650, %v646
        %v767 = vpack.c.b16 %v651, %v647
        %v768 = vpack.c.b16 %v656, %v652
        %v769 = vpack.c.b16 %v657, %v653
        %v770 = vpack.c.b16 %v658, %v654
        %v771 = vpack.c.b16 %v659, %v655
        %v772 = vpack.c.b16 %v664, %v660
        %v773 = vpack.c.b16 %v665, %v661
        %v774 = vpack.c.b16 %v666, %v662
        %v775 = vpack.c.b16 %v667, %v663
        %v776 = vpack.c.b16 %v672, %v668
        %v777 = vpack.c.b16 %v673, %v669
        %v778 = vpack.c.b16 %v674, %v670
        %v779 = vpack.c.b16 %v675, %v671
        %v780 = vpack.c.b16 %v680, %v676
        %v781 = vpack.c.b16 %v681, %v677
        %v782 = vpack.c.b16 %v682, %v678
        %v783 = vpack.c.b16 %v683, %v679
        %v784 = vpack.c.b16 %v688, %v684
        %v785 = vpack.c.b16 %v689, %v685
        %v786 = vpack.c.b16 %v690, %v686
        %v787 = vpack.c.b16 %v691, %v687
        %v788 = vpack.c.b16 %v696, %v692
        %v789 = vpack.c.b16 %v697, %v693
        %v790 = vpack.c.b16 %v698, %v694
        %v791 = vpack.c.b16 %v699, %v695
        %v792 = vpack.c.b16 %v704, %v700
        %v793 = vpack.c.b16 %v705, %v701
        %v794 = vpack.c.b16 %v706, %v702
        %v795 = vpack.c.b16 %v707, %v703
        %v796 = vpack.c.b16 %v712, %v708
        %v797 = vpack.c.b16 %v713, %v709
        %v798 = vpack.c.b16 %v714, %v710
        %v799 = vpack.c.b16 %v715, %v711
        %v800 = vpack.c.b16 %v720, %v716
        %v801 = vpack.c.b16 %v721, %v717
        %v802 = vpack.c.b16 %v722, %v718
        %v803 = vpack.c.b16 %v723, %v719
        %v804 = vpack.c.b16 %v728, %v724
        %v805 = vpack.c.b16 %v729, %v725
        %v806 = vpack.c.b16 %v730, %v726
        %v807 = vpack.c.b16 %v731, %v727
        %v808 = vpack.c.b16 %v736, %v732
        %v809 = vpack.c.b16 %v737, %v733
        %v810 = vpack.c.b16 %v738, %v734
        %v811 = vpack.c.b16 %v739, %v735
        %v812 = vpack.c.b16 %v744, %v740
        %v813 = vpack.c.b16 %v745, %v741
        %v814 = vpack.c.b16 %v746, %v742
        %v815 = vpack.c.b16 %v747, %v743
        %v816 = vpack.c.b16 %v752, %v748
        %v817 = vpack.c.b16 %v753, %v749
        %v818 = vpack.c.b16 %v754, %v750
        %v819 = vpack.c.b16 %v755, %v751
        %884 = vmatprep.subr.bf16.mxu0 %v757
        %885 = vmatpush1.bf16.msra.mxu0 %v756
        %886 = vmatprep.subr.bf16.mxu0 %v761
        %887 = vmatpush1.bf16.msra.mxu0 %v760
        %888 = vmatprep.subr.bf16.mxu0 %v765
        %889 = vmatpush1.bf16.msra.mxu0 %v764
        %890 = vmatprep.subr.bf16.mxu0 %v769
        %891 = vmatpush1.bf16.msra.mxu0 %v768
        %892 = vmatprep.subr.bf16.mxu0 %v773
        %893 = vmatpush1.bf16.msra.mxu0 %v772
        %894 = vmatprep.subr.bf16.mxu0 %v777
        %895 = vmatpush1.bf16.msra.mxu0 %v776
        %896 = vmatprep.subr.bf16.mxu0 %v781
        %897 = vmatpush1.bf16.msra.mxu0 %v780
        %898 = vmatprep.subr.bf16.mxu0 %v785
        %899 = vmatpush1.bf16.msra.mxu0 %v784
        %900 = vmatprep.subr.bf16.mxu0 %v789
        %901 = vmatpush1.bf16.msra.mxu0 %v788
        %902 = vmatprep.subr.bf16.mxu0 %v793
        %903 = vmatpush1.bf16.msra.mxu0 %v792
        %904 = vmatprep.subr.bf16.mxu0 %v797
        %905 = vmatpush1.bf16.msra.mxu0 %v796
        %906 = vmatprep.subr.bf16.mxu0 %v801
        %907 = vmatpush1.bf16.msra.mxu0 %v800
        %908 = vmatprep.subr.bf16.mxu0 %v805
        %909 = vmatpush1.bf16.msra.mxu0 %v804
        %910 = vmatprep.subr.bf16.mxu0 %v809
        %911 = vmatpush1.bf16.msra.mxu0 %v808
        %912 = vmatprep.subr.bf16.mxu0 %v813
        %913 = vmatpush1.bf16.msra.mxu0 %v812
        %914 = vmatprep.subr.bf16.mxu0 %v817
        %915 = vmatpush1.bf16.msra.mxu0 %v816
        %916 = vmatprep.mubr.bf16.mxu0 %v533
        %917 = vmatmul.mubr.bf16.gmra.mrb[0].mxu0 %v532
        %v918 = vpop.f32.mrb[0].mxu0
        %v919 = vadd.f32 %v467, %v918
        %v920 = vpop.f32.mrb[0].mxu0
        %v921 = vadd.f32 %v471, %v920
        %v922 = vpop.f32.mrb[0].mxu0
        %v923 = vadd.f32 %v467, %v922
        %v924 = vpop.f32.mrb[0].mxu0
        %v925 = vadd.f32 %v471, %v924
        %926 = vmatprep.mubr.bf16.mxu0 %v535
        %927 = vmatmul.mubr.bf16.gmra.mrb[0].mxu0 %v534
        %v928 = vpop.f32.mrb[0].mxu0
        %v929 = vadd.f32 %v467, %v928
        %v930 = vpop.f32.mrb[0].mxu0
        %v931 = vadd.f32 %v471, %v930
        %v932 = vpop.f32.mrb[0].mxu0
        %v933 = vadd.f32 %v467, %v932
        %v934 = vpop.f32.mrb[0].mxu0
        %v935 = vadd.f32 %v471, %v934
        %936 = vmatprep.mubr.bf16.mxu0 %v537
        %937 = vmatmul.mubr.bf16.gmra.mrb[0].mxu0 %v536
        %v938 = vpop.f32.mrb[0].mxu0
        %v939 = vadd.f32 %v467, %v938
        %v940 = vpop.f32.mrb[0].mxu0
        %v941 = vadd.f32 %v471, %v940
        %v942 = vpop.f32.mrb[0].mxu0
        %v943 = vadd.f32 %v467, %v942
        %v944 = vpop.f32.mrb[0].mxu0
        %v945 = vadd.f32 %v471, %v944
        %946 = vmatprep.mubr.bf16.mxu0 %v539
        %947 = vmatmul.mubr.bf16.gmra.mrb[0].mxu0 %v538
        %v948 = vpop.f32.mrb[0].mxu0
        %v949 = vadd.f32 %v467, %v948
        %v950 = vpop.f32.mrb[0].mxu0
        %v951 = vadd.f32 %v471, %v950
        %v952 = vpop.f32.mrb[0].mxu0
        %v953 = vadd.f32 %v467, %v952
        %v954 = vpop.f32.mrb[0].mxu0
        %v955 = vadd.f32 %v471, %v954
        %956 = vmatprep.mubr.bf16.mxu0 %v541
        %957 = vmatmul.mubr.bf16.gmra.mrb[0].mxu0 %v540
        %v958 = vpop.f32.mrb[0].mxu0
        %v959 = vadd.f32 %v467, %v958
        %v960 = vpop.f32.mrb[0].mxu0
        %v961 = vadd.f32 %v471, %v960
        %v962 = vpop.f32.mrb[0].mxu0
        %v963 = vadd.f32 %v467, %v962
        %v964 = vpop.f32.mrb[0].mxu0
        %v965 = vadd.f32 %v471, %v964
        %966 = vmatprep.mubr.bf16.mxu0 %v543
        %967 = vmatmul.mubr.bf16.gmra.mrb[0].mxu0 %v542
        %v968 = vpop.f32.mrb[0].mxu0
        %v969 = vadd.f32 %v467, %v968
        %v970 = vpop.f32.mrb[0].mxu0
        %v971 = vadd.f32 %v471, %v970
        %v972 = vpop.f32.mrb[0].mxu0
        %v973 = vadd.f32 %v467, %v972
        %v974 = vpop.f32.mrb[0].mxu0
        %v975 = vadd.f32 %v471, %v974
        %976 = vmatprep.mubr.bf16.mxu0 %v545
        %977 = vmatmul.mubr.bf16.gmra.mrb[0].mxu0 %v544
        %v978 = vpop.f32.mrb[0].mxu0
        %v979 = vadd.f32 %v467, %v978
        %v980 = vpop.f32.mrb[0].mxu0
        %v981 = vadd.f32 %v471, %v980
        %v982 = vpop.f32.mrb[0].mxu0
        %v983 = vadd.f32 %v467, %v982
        %v984 = vpop.f32.mrb[0].mxu0
        %v985 = vadd.f32 %v471, %v984
        %986 = vmatprep.mubr.bf16.mxu0 %v547
        %987 = vmatmul.mubr.bf16.gmra.mrb[0].mxu0 %v546
        %v988 = vpop.f32.mrb[0].mxu0
        %v989 = vadd.f32 %v467, %v988
        %v990 = vpop.f32.mrb[0].mxu0
        %v991 = vadd.f32 %v471, %v990
        %v992 = vpop.f32.mrb[0].mxu0
        %v993 = vadd.f32 %v467, %v992
        %v994 = vpop.f32.mrb[0].mxu0
        %v995 = vadd.f32 %v471, %v994
        %996 = vdwg.mxu0
        %997 = vmatprep.subr.bf16.mxu0 %v759
        %998 = vmatpush1.bf16.msra.mxu0 %v758
        %999 = vmatprep.subr.bf16.mxu0 %v763
        %1000 = vmatpush1.bf16.msra.mxu0 %v762
        %1001 = vmatprep.subr.bf16.mxu0 %v767
        %1002 = vmatpush1.bf16.msra.mxu0 %v766
        %1003 = vmatprep.subr.bf16.mxu0 %v771
        %1004 = vmatpush1.bf16.msra.mxu0 %v770
        %1005 = vmatprep.subr.bf16.mxu0 %v775
        %1006 = vmatpush1.bf16.msra.mxu0 %v774
        %1007 = vmatprep.subr.bf16.mxu0 %v779
        %1008 = vmatpush1.bf16.msra.mxu0 %v778
        %1009 = vmatprep.subr.bf16.mxu0 %v783
        %1010 = vmatpush1.bf16.msra.mxu0 %v782
        %1011 = vmatprep.subr.bf16.mxu0 %v787
        %1012 = vmatpush1.bf16.msra.mxu0 %v786
        %1013 = vmatprep.subr.bf16.mxu0 %v791
        %1014 = vmatpush1.bf16.msra.mxu0 %v790
        %1015 = vmatprep.subr.bf16.mxu0 %v795
        %1016 = vmatpush1.bf16.msra.mxu0 %v794
        %1017 = vmatprep.subr.bf16.mxu0 %v799
        %1018 = vmatpush1.bf16.msra.mxu0 %v798
        %1019 = vmatprep.subr.bf16.mxu0 %v803
        %1020 = vmatpush1.bf16.msra.mxu0 %v802
        %1021 = vmatprep.subr.bf16.mxu0 %v807
        %1022 = vmatpush1.bf16.msra.mxu0 %v806
        %1023 = vmatprep.subr.bf16.mxu0 %v811
        %1024 = vmatpush1.bf16.msra.mxu0 %v810
        %1025 = vmatprep.subr.bf16.mxu0 %v815
        %1026 = vmatpush1.bf16.msra.mxu0 %v814
        %1027 = vmatprep.subr.bf16.mxu0 %v819
        %1028 = vmatpush1.bf16.msra.mxu0 %v818
        %1029 = vmatprep.mubr.bf16.mxu0 %v533
        %1030 = vmatmul.mubr.bf16.gmra.mrb[0].mxu0 %v532
        %v1031 = vpop.f32.mrb[0].mxu0
        %v1032 = vadd.f32 %v475, %v1031
        %v1033 = vpop.f32.mrb[0].mxu0
        %v1034 = vadd.f32 %v479, %v1033
        %v1035 = vpop.f32.mrb[0].mxu0
        %v1036 = vadd.f32 %v475, %v1035
        %v1037 = vpop.f32.mrb[0].mxu0
        %v1038 = vadd.f32 %v479, %v1037
        %1039 = vmatprep.mubr.bf16.mxu0 %v535
        %1040 = vmatmul.mubr.bf16.gmra.mrb[0].mxu0 %v534
        %v1041 = vpop.f32.mrb[0].mxu0
        %v1042 = vadd.f32 %v475, %v1041
        %v1043 = vpop.f32.mrb[0].mxu0
        %v1044 = vadd.f32 %v479, %v1043
        %v1045 = vpop.f32.mrb[0].mxu0
        %v1046 = vadd.f32 %v475, %v1045
        %v1047 = vpop.f32.mrb[0].mxu0
        %v1048 = vadd.f32 %v479, %v1047
        %1049 = vmatprep.mubr.bf16.mxu0 %v537
        %1050 = vmatmul.mubr.bf16.gmra.mrb[0].mxu0 %v536
        %v1051 = vpop.f32.mrb[0].mxu0
        %v1052 = vadd.f32 %v475, %v1051
        %v1053 = vpop.f32.mrb[0].mxu0
        %v1054 = vadd.f32 %v479, %v1053
        %v1055 = vpop.f32.mrb[0].mxu0
        %v1056 = vadd.f32 %v475, %v1055
        %v1057 = vpop.f32.mrb[0].mxu0
        %v1058 = vadd.f32 %v479, %v1057
        %1059 = vmatprep.mubr.bf16.mxu0 %v539
        %1060 = vmatmul.mubr.bf16.gmra.mrb[0].mxu0 %v538
        %v1061 = vpop.f32.mrb[0].mxu0
        %v1062 = vadd.f32 %v475, %v1061
        %v1063 = vpop.f32.mrb[0].mxu0
        %v1064 = vadd.f32 %v479, %v1063
        %v1065 = vpop.f32.mrb[0].mxu0
        %v1066 = vadd.f32 %v475, %v1065
        %v1067 = vpop.f32.mrb[0].mxu0
        %v1068 = vadd.f32 %v479, %v1067
        %1069 = vmatprep.mubr.bf16.mxu0 %v541
        %1070 = vmatmul.mubr.bf16.gmra.mrb[0].mxu0 %v540
        %v1071 = vpop.f32.mrb[0].mxu0
        %v1072 = vadd.f32 %v475, %v1071
        %v1073 = vpop.f32.mrb[0].mxu0
        %v1074 = vadd.f32 %v479, %v1073
        %v1075 = vpop.f32.mrb[0].mxu0
        %v1076 = vadd.f32 %v475, %v1075
        %v1077 = vpop.f32.mrb[0].mxu0
        %v1078 = vadd.f32 %v479, %v1077
        %1079 = vmatprep.mubr.bf16.mxu0 %v543
        %1080 = vmatmul.mubr.bf16.gmra.mrb[0].mxu0 %v542
        %v1081 = vpop.f32.mrb[0].mxu0
        %v1082 = vadd.f32 %v475, %v1081
        %v1083 = vpop.f32.mrb[0].mxu0
        %v1084 = vadd.f32 %v479, %v1083
        %v1085 = vpop.f32.mrb[0].mxu0
        %v1086 = vadd.f32 %v475, %v1085
        %v1087 = vpop.f32.mrb[0].mxu0
        %v1088 = vadd.f32 %v479, %v1087
        %1089 = vmatprep.mubr.bf16.mxu0 %v545
        %1090 = vmatmul.mubr.bf16.gmra.mrb[0].mxu0 %v544
        %v1091 = vpop.f32.mrb[0].mxu0
        %v1092 = vadd.f32 %v475, %v1091
        %v1093 = vpop.f32.mrb[0].mxu0
        %v1094 = vadd.f32 %v479, %v1093
        %v1095 = vpop.f32.mrb[0].mxu0
        %v1096 = vadd.f32 %v475, %v1095
        %v1097 = vpop.f32.mrb[0].mxu0
        %v1098 = vadd.f32 %v479, %v1097
        %1099 = vmatprep.mubr.bf16.mxu0 %v547
        %1100 = vmatmul.mubr.bf16.gmra.mrb[0].mxu0 %v546
        %v1101 = vpop.f32.mrb[0].mxu0
        %v1102 = vadd.f32 %v475, %v1101
        %v1103 = vpop.f32.mrb[0].mxu0
        %v1104 = vadd.f32 %v479, %v1103
        %v1105 = vpop.f32.mrb[0].mxu0
        %v1106 = vadd.f32 %v475, %v1105
        %v1107 = vpop.f32.mrb[0].mxu0
        %v1108 = vadd.f32 %v479, %v1107
        %1109 = vdwg.mxu0
        %v1110 = vmax.f32 %v919, 0.0
        %v1111 = vmax.f32 %v921, 0.0
        %v1112 = vmax.f32 %v1032, 0.0
        %v1113 = vmax.f32 %v1034, 0.0
        %v1114 = vmax.f32 %v923, 0.0
        %v1115 = vmax.f32 %v925, 0.0
        %v1116 = vmax.f32 %v1036, 0.0
        %v1117 = vmax.f32 %v1038, 0.0
        %v1118 = vmax.f32 %v929, 0.0
        %v1119 = vmax.f32 %v931, 0.0
        %v1120 = vmax.f32 %v1042, 0.0
        %v1121 = vmax.f32 %v1044, 0.0
        %v1122 = vmax.f32 %v933, 0.0
        %v1123 = vmax.f32 %v935, 0.0
        %v1124 = vmax.f32 %v1046, 0.0
        %v1125 = vmax.f32 %v1048, 0.0
        %v1126 = vmax.f32 %v939, 0.0
        %v1127 = vmax.f32 %v941, 0.0
        %v1128 = vmax.f32 %v1052, 0.0
        %v1129 = vmax.f32 %v1054, 0.0
        %v1130 = vmax.f32 %v943, 0.0
        %v1131 = vmax.f32 %v945, 0.0
        %v1132 = vmax.f32 %v1056, 0.0
        %v1133 = vmax.f32 %v1058, 0.0
        %v1134 = vmax.f32 %v949, 0.0
        %v1135 = vmax.f32 %v951, 0.0
        %v1136 = vmax.f32 %v1062, 0.0
        %v1137 = vmax.f32 %v1064, 0.0
        %v1138 = vmax.f32 %v953, 0.0
        %v1139 = vmax.f32 %v955, 0.0
        %v1140 = vmax.f32 %v1066, 0.0
        %v1141 = vmax.f32 %v1068, 0.0
        %v1142 = vmax.f32 %v959, 0.0
        %v1143 = vmax.f32 %v961, 0.0
        %v1144 = vmax.f32 %v1072, 0.0
        %v1145 = vmax.f32 %v1074, 0.0
        %v1146 = vmax.f32 %v963, 0.0
        %v1147 = vmax.f32 %v965, 0.0
        %v1148 = vmax.f32 %v1076, 0.0
        %v1149 = vmax.f32 %v1078, 0.0
        %v1150 = vmax.f32 %v969, 0.0
        %v1151 = vmax.f32 %v971, 0.0
        %v1152 = vmax.f32 %v1082, 0.0
        %v1153 = vmax.f32 %v1084, 0.0
        %v1154 = vmax.f32 %v973, 0.0
        %v1155 = vmax.f32 %v975, 0.0
        %v1156 = vmax.f32 %v1086, 0.0
        %v1157 = vmax.f32 %v1088, 0.0
        %v1158 = vmax.f32 %v979, 0.0
        %v1159 = vmax.f32 %v981, 0.0
        %v1160 = vmax.f32 %v1092, 0.0
        %v1161 = vmax.f32 %v1094, 0.0
        %v1162 = vmax.f32 %v983, 0.0
        %v1163 = vmax.f32 %v985, 0.0
        %v1164 = vmax.f32 %v1096, 0.0
        %v1165 = vmax.f32 %v1098, 0.0
        %v1166 = vmax.f32 %v989, 0.0
        %v1167 = vmax.f32 %v991, 0.0
        %v1168 = vmax.f32 %v1102, 0.0
        %v1169 = vmax.f32 %v1104, 0.0
        %v1170 = vmax.f32 %v993, 0.0
        %v1171 = vmax.f32 %v995, 0.0
        %v1172 = vmax.f32 %v1106, 0.0
        %v1173 = vmax.f32 %v1108, 0.0
        %v1174 = vpack.c.bf16 %v1114, %v1110
        %v1175 = vpack.c.bf16 %v1115, %v1111
        %v1176 = vpack.c.bf16 %v1116, %v1112
        %v1177 = vpack.c.bf16 %v1117, %v1113
        %v1178 = vpack.c.bf16 %v1122, %v1118
        %v1179 = vpack.c.bf16 %v1123, %v1119
        %v1180 = vpack.c.bf16 %v1124, %v1120
        %v1181 = vpack.c.bf16 %v1125, %v1121
        %v1182 = vpack.c.bf16 %v1130, %v1126
        %v1183 = vpack.c.bf16 %v1131, %v1127
        %v1184 = vpack.c.bf16 %v1132, %v1128
        %v1185 = vpack.c.bf16 %v1133, %v1129
        %v1186 = vpack.c.bf16 %v1138, %v1134
        %v1187 = vpack.c.bf16 %v1139, %v1135
        %v1188 = vpack.c.bf16 %v1140, %v1136
        %v1189 = vpack.c.bf16 %v1141, %v1137
        %v1190 = vpack.c.bf16 %v1146, %v1142
        %v1191 = vpack.c.bf16 %v1147, %v1143
        %v1192 = vpack.c.bf16 %v1148, %v1144
        %v1193 = vpack.c.bf16 %v1149, %v1145
        %v1194 = vpack.c.bf16 %v1154, %v1150
        %v1195 = vpack.c.bf16 %v1155, %v1151
        %v1196 = vpack.c.bf16 %v1156, %v1152
        %v1197 = vpack.c.bf16 %v1157, %v1153
        %v1198 = vpack.c.bf16 %v1162, %v1158
        %v1199 = vpack.c.bf16 %v1163, %v1159
        %v1200 = vpack.c.bf16 %v1164, %v1160
        %v1201 = vpack.c.bf16 %v1165, %v1161
        %v1202 = vpack.c.bf16 %v1170, %v1166
        %v1203 = vpack.c.bf16 %v1171, %v1167
        %v1204 = vpack.c.bf16 %v1172, %v1168
        %v1205 = vpack.c.bf16 %v1173, %v1169
        %v1206 = vld [vmem:[#allocation8] sm:$0xff]
        %v1207 = vld [vmem:[#allocation8 + $0x8] sm:$0xff]
        %v1208 = vld [vmem:[#allocation8 + $0x10] sm:$0xff]
        %v1209 = vld [vmem:[#allocation8 + $0x18] sm:$0xff]
        %v1210 = vld [vmem:[#allocation8 + $0x20] sm:$0xff]
        %v1211 = vld [vmem:[#allocation8 + $0x28] sm:$0xff]
        %v1212 = vld [vmem:[#allocation8 + $0x30] sm:$0xff]
        %v1213 = vld [vmem:[#allocation8 + $0x38] sm:$0xff]
        %v1214 = vld [vmem:[#allocation8 + $0x40] sm:$0xff]
        %v1215 = vld [vmem:[#allocation8 + $0x48] sm:$0xff]
        %v1216 = vld [vmem:[#allocation8 + $0x50] sm:$0xff]
        %v1217 = vld [vmem:[#allocation8 + $0x58] sm:$0xff]
        %v1218 = vld [vmem:[#allocation8 + $0x60] sm:$0xff]
        %v1219 = vld [vmem:[#allocation8 + $0x68] sm:$0xff]
        %v1220 = vld [vmem:[#allocation8 + $0x70] sm:$0xff]
        %v1221 = vld [vmem:[#allocation8 + $0x78] sm:$0xff]
        %v1222 = vld [vmem:[#allocation8 + $0x80] sm:$0xff]
        %v1223 = vld [vmem:[#allocation8 + $0x88] sm:$0xff]
        %v1224 = vld [vmem:[#allocation8 + $0x90] sm:$0xff]
        %v1225 = vld [vmem:[#allocation8 + $0x98] sm:$0xff]
        %v1226 = vld [vmem:[#allocation8 + $0xa0] sm:$0xff]
        %v1227 = vld [vmem:[#allocation8 + $0xa8] sm:$0xff]
        %v1228 = vld [vmem:[#allocation8 + $0xb0] sm:$0xff]
        %v1229 = vld [vmem:[#allocation8 + $0xb8] sm:$0xff]
        %v1230 = vld [vmem:[#allocation8 + $0xc0] sm:$0xff]
        %v1231 = vld [vmem:[#allocation8 + $0xc8] sm:$0xff]
        %v1232 = vld [vmem:[#allocation8 + $0xd0] sm:$0xff]
        %v1233 = vld [vmem:[#allocation8 + $0xd8] sm:$0xff]
        %v1234 = vld [vmem:[#allocation8 + $0xe0] sm:$0xff]
        %v1235 = vld [vmem:[#allocation8 + $0xe8] sm:$0xff]
        %v1236 = vld [vmem:[#allocation8 + $0xf0] sm:$0xff]
        %v1237 = vld [vmem:[#allocation8 + $0xf8] sm:$0xff]
        %v1238 = vld [vmem:[#allocation8 + $0x100] sm:$0xff]
        %v1239 = vld [vmem:[#allocation8 + $0x108] sm:$0xff]
        %v1240 = vld [vmem:[#allocation8 + $0x110] sm:$0xff]
        %v1241 = vld [vmem:[#allocation8 + $0x118] sm:$0xff]
        %v1242 = vld [vmem:[#allocation8 + $0x120] sm:$0xff]
        %v1243 = vld [vmem:[#allocation8 + $0x128] sm:$0xff]
        %v1244 = vld [vmem:[#allocation8 + $0x130] sm:$0xff]
        %v1245 = vld [vmem:[#allocation8 + $0x138] sm:$0xff]
        %v1246 = vld [vmem:[#allocation8 + $0x140] sm:$0xff]
        %v1247 = vld [vmem:[#allocation8 + $0x148] sm:$0xff]
        %v1248 = vld [vmem:[#allocation8 + $0x150] sm:$0xff]
        %v1249 = vld [vmem:[#allocation8 + $0x158] sm:$0xff]
        %v1250 = vld [vmem:[#allocation8 + $0x160] sm:$0xff]
        %v1251 = vld [vmem:[#allocation8 + $0x168] sm:$0xff]
        %v1252 = vld [vmem:[#allocation8 + $0x170] sm:$0xff]
        %v1253 = vld [vmem:[#allocation8 + $0x178] sm:$0xff]
        %v1254 = vld [vmem:[#allocation8 + $0x180] sm:$0xff]
        %v1255 = vld [vmem:[#allocation8 + $0x188] sm:$0xff]
        %v1256 = vld [vmem:[#allocation8 + $0x190] sm:$0xff]
        %v1257 = vld [vmem:[#allocation8 + $0x198] sm:$0xff]
        %v1258 = vld [vmem:[#allocation8 + $0x1a0] sm:$0xff]
        %v1259 = vld [vmem:[#allocation8 + $0x1a8] sm:$0xff]
        %v1260 = vld [vmem:[#allocation8 + $0x1b0] sm:$0xff]
        %v1261 = vld [vmem:[#allocation8 + $0x1b8] sm:$0xff]
        %v1262 = vld [vmem:[#allocation8 + $0x1c0] sm:$0xff]
        %v1263 = vld [vmem:[#allocation8 + $0x1c8] sm:$0xff]
        %v1264 = vld [vmem:[#allocation8 + $0x1d0] sm:$0xff]
        %v1265 = vld [vmem:[#allocation8 + $0x1d8] sm:$0xff]
        %v1266 = vld [vmem:[#allocation8 + $0x1e0] sm:$0xff]
        %v1267 = vld [vmem:[#allocation8 + $0x1e8] sm:$0xff]
        %v1268 = vld [vmem:[#allocation8 + $0x1f0] sm:$0xff]
        %v1269 = vld [vmem:[#allocation8 + $0x1f8] sm:$0xff]
        %v1270 = vld [vmem:[#allocation10] sm:$0x3]
        %v1272 = vlaneseq
        %v1273 = vshrl.u32 %v1272, 7
        %v1274 = vsub.s32 0, %v1273
        %v1275 = vrot.slane %v1270, %v1274
        %v1276 = vlaneseq
        %v1277 = vshrl.u32 %v1276, 7
        %v1278 = vsub.s32 1, %v1277
        %v1279 = vrot.slane %v1270, %v1278
        %v1346 = vunpack.c.l.b16 %v1206
        %v1347 = vunpack.c.h.b16 %v1206
        %v1348 = vunpack.c.l.b16 %v1207
        %v1349 = vunpack.c.h.b16 %v1207
        %v1350 = vunpack.c.l.b16 %v1208
        %v1351 = vunpack.c.h.b16 %v1208
        %v1352 = vunpack.c.l.b16 %v1209
        %v1353 = vunpack.c.h.b16 %v1209
        %v1354 = vunpack.c.l.b16 %v1210
        %v1355 = vunpack.c.h.b16 %v1210
        %v1356 = vunpack.c.l.b16 %v1211
        %v1357 = vunpack.c.h.b16 %v1211
        %v1358 = vunpack.c.l.b16 %v1212
        %v1359 = vunpack.c.h.b16 %v1212
        %v1360 = vunpack.c.l.b16 %v1213
        %v1361 = vunpack.c.h.b16 %v1213
        %v1362 = vunpack.c.l.b16 %v1214
        %v1363 = vunpack.c.h.b16 %v1214
        %v1364 = vunpack.c.l.b16 %v1215
        %v1365 = vunpack.c.h.b16 %v1215
        %v1366 = vunpack.c.l.b16 %v1216
        %v1367 = vunpack.c.h.b16 %v1216
        %v1368 = vunpack.c.l.b16 %v1217
        %v1369 = vunpack.c.h.b16 %v1217
        %v1370 = vunpack.c.l.b16 %v1218
        %v1371 = vunpack.c.h.b16 %v1218
        %v1372 = vunpack.c.l.b16 %v1219
        %v1373 = vunpack.c.h.b16 %v1219
        %v1374 = vunpack.c.l.b16 %v1220
        %v1375 = vunpack.c.h.b16 %v1220
        %v1376 = vunpack.c.l.b16 %v1221
        %v1377 = vunpack.c.h.b16 %v1221
        %v1378 = vunpack.c.l.b16 %v1222
        %v1379 = vunpack.c.h.b16 %v1222
        %v1380 = vunpack.c.l.b16 %v1223
        %v1381 = vunpack.c.h.b16 %v1223
        %v1382 = vunpack.c.l.b16 %v1224
        %v1383 = vunpack.c.h.b16 %v1224
        %v1384 = vunpack.c.l.b16 %v1225
        %v1385 = vunpack.c.h.b16 %v1225
        %v1386 = vunpack.c.l.b16 %v1226
        %v1387 = vunpack.c.h.b16 %v1226
        %v1388 = vunpack.c.l.b16 %v1227
        %v1389 = vunpack.c.h.b16 %v1227
        %v1390 = vunpack.c.l.b16 %v1228
        %v1391 = vunpack.c.h.b16 %v1228
        %v1392 = vunpack.c.l.b16 %v1229
        %v1393 = vunpack.c.h.b16 %v1229
        %v1394 = vunpack.c.l.b16 %v1230
        %v1395 = vunpack.c.h.b16 %v1230
        %v1396 = vunpack.c.l.b16 %v1231
        %v1397 = vunpack.c.h.b16 %v1231
        %v1398 = vunpack.c.l.b16 %v1232
        %v1399 = vunpack.c.h.b16 %v1232
        %v1400 = vunpack.c.l.b16 %v1233
        %v1401 = vunpack.c.h.b16 %v1233
        %v1402 = vunpack.c.l.b16 %v1234
        %v1403 = vunpack.c.h.b16 %v1234
        %v1404 = vunpack.c.l.b16 %v1235
        %v1405 = vunpack.c.h.b16 %v1235
        %v1406 = vunpack.c.l.b16 %v1236
        %v1407 = vunpack.c.h.b16 %v1236
        %v1408 = vunpack.c.l.b16 %v1237
        %v1409 = vunpack.c.h.b16 %v1237
        %v1410 = vunpack.c.l.b16 %v1238
        %v1411 = vunpack.c.h.b16 %v1238
        %v1412 = vunpack.c.l.b16 %v1239
        %v1413 = vunpack.c.h.b16 %v1239
        %v1414 = vunpack.c.l.b16 %v1240
        %v1415 = vunpack.c.h.b16 %v1240
        %v1416 = vunpack.c.l.b16 %v1241
        %v1417 = vunpack.c.h.b16 %v1241
        %v1418 = vunpack.c.l.b16 %v1242
        %v1419 = vunpack.c.h.b16 %v1242
        %v1420 = vunpack.c.l.b16 %v1243
        %v1421 = vunpack.c.h.b16 %v1243
        %v1422 = vunpack.c.l.b16 %v1244
        %v1423 = vunpack.c.h.b16 %v1244
        %v1424 = vunpack.c.l.b16 %v1245
        %v1425 = vunpack.c.h.b16 %v1245
        %v1426 = vunpack.c.l.b16 %v1246
        %v1427 = vunpack.c.h.b16 %v1246
        %v1428 = vunpack.c.l.b16 %v1247
        %v1429 = vunpack.c.h.b16 %v1247
        %v1430 = vunpack.c.l.b16 %v1248
        %v1431 = vunpack.c.h.b16 %v1248
        %v1432 = vunpack.c.l.b16 %v1249
        %v1433 = vunpack.c.h.b16 %v1249
        %v1434 = vunpack.c.l.b16 %v1250
        %v1435 = vunpack.c.h.b16 %v1250
        %v1436 = vunpack.c.l.b16 %v1251
        %v1437 = vunpack.c.h.b16 %v1251
        %v1438 = vunpack.c.l.b16 %v1252
        %v1439 = vunpack.c.h.b16 %v1252
        %v1440 = vunpack.c.l.b16 %v1253
        %v1441 = vunpack.c.h.b16 %v1253
        %v1442 = vunpack.c.l.b16 %v1254
        %v1443 = vunpack.c.h.b16 %v1254
        %v1444 = vunpack.c.l.b16 %v1255
        %v1445 = vunpack.c.h.b16 %v1255
        %v1446 = vunpack.c.l.b16 %v1256
        %v1447 = vunpack.c.h.b16 %v1256
        %v1448 = vunpack.c.l.b16 %v1257
        %v1449 = vunpack.c.h.b16 %v1257
        %v1450 = vunpack.c.l.b16 %v1258
        %v1451 = vunpack.c.h.b16 %v1258
        %v1452 = vunpack.c.l.b16 %v1259
        %v1453 = vunpack.c.h.b16 %v1259
        %v1454 = vunpack.c.l.b16 %v1260
        %v1455 = vunpack.c.h.b16 %v1260
        %v1456 = vunpack.c.l.b16 %v1261
        %v1457 = vunpack.c.h.b16 %v1261
        %v1458 = vunpack.c.l.b16 %v1262
        %v1459 = vunpack.c.h.b16 %v1262
        %v1460 = vunpack.c.l.b16 %v1263
        %v1461 = vunpack.c.h.b16 %v1263
        %v1462 = vunpack.c.l.b16 %v1264
        %v1463 = vunpack.c.h.b16 %v1264
        %v1464 = vunpack.c.l.b16 %v1265
        %v1465 = vunpack.c.h.b16 %v1265
        %v1466 = vunpack.c.l.b16 %v1266
        %v1467 = vunpack.c.h.b16 %v1266
        %v1468 = vunpack.c.l.b16 %v1267
        %v1469 = vunpack.c.h.b16 %v1267
        %v1470 = vunpack.c.l.b16 %v1268
        %v1471 = vunpack.c.h.b16 %v1268
        %v1472 = vunpack.c.l.b16 %v1269
        %v1473 = vunpack.c.h.b16 %v1269
        %v1474 = vpack.c.b16 %v1348, %v1346
        %v1475 = vpack.c.b16 %v1349, %v1347
        %v1476 = vpack.c.b16 %v1352, %v1350
        %v1477 = vpack.c.b16 %v1353, %v1351
        %v1478 = vpack.c.b16 %v1356, %v1354
        %v1479 = vpack.c.b16 %v1357, %v1355
        %v1480 = vpack.c.b16 %v1360, %v1358
        %v1481 = vpack.c.b16 %v1361, %v1359
        %v1482 = vpack.c.b16 %v1364, %v1362
        %v1483 = vpack.c.b16 %v1365, %v1363
        %v1484 = vpack.c.b16 %v1368, %v1366
        %v1485 = vpack.c.b16 %v1369, %v1367
        %v1486 = vpack.c.b16 %v1372, %v1370
        %v1487 = vpack.c.b16 %v1373, %v1371
        %v1488 = vpack.c.b16 %v1376, %v1374
        %v1489 = vpack.c.b16 %v1377, %v1375
        %v1490 = vpack.c.b16 %v1380, %v1378
        %v1491 = vpack.c.b16 %v1381, %v1379
        %v1492 = vpack.c.b16 %v1384, %v1382
        %v1493 = vpack.c.b16 %v1385, %v1383
        %v1494 = vpack.c.b16 %v1388, %v1386
        %v1495 = vpack.c.b16 %v1389, %v1387
        %v1496 = vpack.c.b16 %v1392, %v1390
        %v1497 = vpack.c.b16 %v1393, %v1391
        %v1498 = vpack.c.b16 %v1396, %v1394
        %v1499 = vpack.c.b16 %v1397, %v1395
        %v1500 = vpack.c.b16 %v1400, %v1398
        %v1501 = vpack.c.b16 %v1401, %v1399
        %v1502 = vpack.c.b16 %v1404, %v1402
        %v1503 = vpack.c.b16 %v1405, %v1403
        %v1504 = vpack.c.b16 %v1408, %v1406
        %v1505 = vpack.c.b16 %v1409, %v1407
        %v1506 = vpack.c.b16 %v1412, %v1410
        %v1507 = vpack.c.b16 %v1413, %v1411
        %v1508 = vpack.c.b16 %v1416, %v1414
        %v1509 = vpack.c.b16 %v1417, %v1415
        %v1510 = vpack.c.b16 %v1420, %v1418
        %v1511 = vpack.c.b16 %v1421, %v1419
        %v1512 = vpack.c.b16 %v1424, %v1422
        %v1513 = vpack.c.b16 %v1425, %v1423
        %v1514 = vpack.c.b16 %v1428, %v1426
        %v1515 = vpack.c.b16 %v1429, %v1427
        %v1516 = vpack.c.b16 %v1432, %v1430
        %v1517 = vpack.c.b16 %v1433, %v1431
        %v1518 = vpack.c.b16 %v1436, %v1434
        %v1519 = vpack.c.b16 %v1437, %v1435
        %v1520 = vpack.c.b16 %v1440, %v1438
        %v1521 = vpack.c.b16 %v1441, %v1439
        %v1522 = vpack.c.b16 %v1444, %v1442
        %v1523 = vpack.c.b16 %v1445, %v1443
        %v1524 = vpack.c.b16 %v1448, %v1446
        %v1525 = vpack.c.b16 %v1449, %v1447
        %v1526 = vpack.c.b16 %v1452, %v1450
        %v1527 = vpack.c.b16 %v1453, %v1451
        %v1528 = vpack.c.b16 %v1456, %v1454
        %v1529 = vpack.c.b16 %v1457, %v1455
        %v1530 = vpack.c.b16 %v1460, %v1458
        %v1531 = vpack.c.b16 %v1461, %v1459
        %v1532 = vpack.c.b16 %v1464, %v1462
        %v1533 = vpack.c.b16 %v1465, %v1463
        %v1534 = vpack.c.b16 %v1468, %v1466
        %v1535 = vpack.c.b16 %v1469, %v1467
        %v1536 = vpack.c.b16 %v1472, %v1470
        %v1537 = vpack.c.b16 %v1473, %v1471
        %1602 = vmatprep.subr.bf16.mxu0 %v1475
        %1603 = vmatpush1.bf16.msra.mxu0 %v1474
        %1604 = vmatprep.subr.bf16.mxu0 %v1477
        %1605 = vmatpush1.bf16.msra.mxu0 %v1476
        %1606 = vmatprep.subr.bf16.mxu0 %v1479
        %1607 = vmatpush1.bf16.msra.mxu0 %v1478
        %1608 = vmatprep.subr.bf16.mxu0 %v1481
        %1609 = vmatpush1.bf16.msra.mxu0 %v1480
        %1610 = vmatprep.subr.bf16.mxu0 %v1483
        %1611 = vmatpush1.bf16.msra.mxu0 %v1482
        %1612 = vmatprep.subr.bf16.mxu0 %v1485
        %1613 = vmatpush1.bf16.msra.mxu0 %v1484
        %1614 = vmatprep.subr.bf16.mxu0 %v1487
        %1615 = vmatpush1.bf16.msra.mxu0 %v1486
        %1616 = vmatprep.subr.bf16.mxu0 %v1489
        %1617 = vmatpush1.bf16.msra.mxu0 %v1488
        %1618 = vmatprep.subr.bf16.mxu0 %v1491
        %1619 = vmatpush1.bf16.msra.mxu0 %v1490
        %1620 = vmatprep.subr.bf16.mxu0 %v1493
        %1621 = vmatpush1.bf16.msra.mxu0 %v1492
        %1622 = vmatprep.subr.bf16.mxu0 %v1495
        %1623 = vmatpush1.bf16.msra.mxu0 %v1494
        %1624 = vmatprep.subr.bf16.mxu0 %v1497
        %1625 = vmatpush1.bf16.msra.mxu0 %v1496
        %1626 = vmatprep.subr.bf16.mxu0 %v1499
        %1627 = vmatpush1.bf16.msra.mxu0 %v1498
        %1628 = vmatprep.subr.bf16.mxu0 %v1501
        %1629 = vmatpush1.bf16.msra.mxu0 %v1500
        %1630 = vmatprep.subr.bf16.mxu0 %v1503
        %1631 = vmatpush1.bf16.msra.mxu0 %v1502
        %1632 = vmatprep.subr.bf16.mxu0 %v1505
        %1633 = vmatpush1.bf16.msra.mxu0 %v1504
        %1634 = vmatprep.mubr.bf16.mxu0 %v1175
        %1635 = vmatmul.mubr.bf16.gmra.mrb[0].mxu0 %v1174
        %v1636 = vpop.f32.mrb[0].mxu0
        %v1637 = vadd.f32 %v1275, %v1636
        %v1638 = vpop.f32.mrb[0].mxu0
        %v1639 = vadd.f32 %v1279, %v1638
        %v1640 = vpop.f32.mrb[0].mxu0
        %v1641 = vadd.f32 %v1275, %v1640
        %v1642 = vpop.f32.mrb[0].mxu0
        %v1643 = vadd.f32 %v1279, %v1642
        %1644 = vmatprep.mubr.bf16.mxu0 %v1179
        %1645 = vmatmul.mubr.bf16.gmra.mrb[0].mxu0 %v1178
        %v1646 = vpop.f32.mrb[0].mxu0
        %v1647 = vadd.f32 %v1275, %v1646
        %v1648 = vpop.f32.mrb[0].mxu0
        %v1649 = vadd.f32 %v1279, %v1648
        %v1650 = vpop.f32.mrb[0].mxu0
        %v1651 = vadd.f32 %v1275, %v1650
        %v1652 = vpop.f32.mrb[0].mxu0
        %v1653 = vadd.f32 %v1279, %v1652
        %1654 = vmatprep.mubr.bf16.mxu0 %v1183
        %1655 = vmatmul.mubr.bf16.gmra.mrb[0].mxu0 %v1182
        %v1656 = vpop.f32.mrb[0].mxu0
        %v1657 = vadd.f32 %v1275, %v1656
        %v1658 = vpop.f32.mrb[0].mxu0
        %v1659 = vadd.f32 %v1279, %v1658
        %v1660 = vpop.f32.mrb[0].mxu0
        %v1661 = vadd.f32 %v1275, %v1660
        %v1662 = vpop.f32.mrb[0].mxu0
        %v1663 = vadd.f32 %v1279, %v1662
        %1664 = vmatprep.mubr.bf16.mxu0 %v1187
        %1665 = vmatmul.mubr.bf16.gmra.mrb[0].mxu0 %v1186
        %v1666 = vpop.f32.mrb[0].mxu0
        %v1667 = vadd.f32 %v1275, %v1666
        %v1668 = vpop.f32.mrb[0].mxu0
        %v1669 = vadd.f32 %v1279, %v1668
        %v1670 = vpop.f32.mrb[0].mxu0
        %v1671 = vadd.f32 %v1275, %v1670
        %v1672 = vpop.f32.mrb[0].mxu0
        %v1673 = vadd.f32 %v1279, %v1672
        %1674 = vmatprep.mubr.bf16.mxu0 %v1191
        %1675 = vmatmul.mubr.bf16.gmra.mrb[0].mxu0 %v1190
        %v1676 = vpop.f32.mrb[0].mxu0
        %v1677 = vadd.f32 %v1275, %v1676
        %v1678 = vpop.f32.mrb[0].mxu0
        %v1679 = vadd.f32 %v1279, %v1678
        %v1680 = vpop.f32.mrb[0].mxu0
        %v1681 = vadd.f32 %v1275, %v1680
        %v1682 = vpop.f32.mrb[0].mxu0
        %v1683 = vadd.f32 %v1279, %v1682
        %1684 = vmatprep.mubr.bf16.mxu0 %v1195
        %1685 = vmatmul.mubr.bf16.gmra.mrb[0].mxu0 %v1194
        %v1686 = vpop.f32.mrb[0].mxu0
        %v1687 = vadd.f32 %v1275, %v1686
        %v1688 = vpop.f32.mrb[0].mxu0
        %v1689 = vadd.f32 %v1279, %v1688
        %v1690 = vpop.f32.mrb[0].mxu0
        %v1691 = vadd.f32 %v1275, %v1690
        %v1692 = vpop.f32.mrb[0].mxu0
        %v1693 = vadd.f32 %v1279, %v1692
        %1694 = vmatprep.mubr.bf16.mxu0 %v1199
        %1695 = vmatmul.mubr.bf16.gmra.mrb[0].mxu0 %v1198
        %v1696 = vpop.f32.mrb[0].mxu0
        %v1697 = vadd.f32 %v1275, %v1696
        %v1698 = vpop.f32.mrb[0].mxu0
        %v1699 = vadd.f32 %v1279, %v1698
        %v1700 = vpop.f32.mrb[0].mxu0
        %v1701 = vadd.f32 %v1275, %v1700
        %v1702 = vpop.f32.mrb[0].mxu0
        %v1703 = vadd.f32 %v1279, %v1702
        %1704 = vmatprep.mubr.bf16.mxu0 %v1203
        %1705 = vmatmul.mubr.bf16.gmra.mrb[0].mxu0 %v1202
        %v1706 = vpop.f32.mrb[0].mxu0
        %v1707 = vadd.f32 %v1275, %v1706
        %v1708 = vpop.f32.mrb[0].mxu0
        %v1709 = vadd.f32 %v1279, %v1708
        %v1710 = vpop.f32.mrb[0].mxu0
        %v1711 = vadd.f32 %v1275, %v1710
        %v1712 = vpop.f32.mrb[0].mxu0
        %v1713 = vadd.f32 %v1279, %v1712
        %1714 = vdwg.mxu0
        %1715 = vmatprep.subr.bf16.mxu0 %v1507
        %1716 = vmatpush1.bf16.msra.mxu0 %v1506
        %1717 = vmatprep.subr.bf16.mxu0 %v1509
        %1718 = vmatpush1.bf16.msra.mxu0 %v1508
        %1719 = vmatprep.subr.bf16.mxu0 %v1511
        %1720 = vmatpush1.bf16.msra.mxu0 %v1510
        %1721 = vmatprep.subr.bf16.mxu0 %v1513
        %1722 = vmatpush1.bf16.msra.mxu0 %v1512
        %1723 = vmatprep.subr.bf16.mxu0 %v1515
        %1724 = vmatpush1.bf16.msra.mxu0 %v1514
        %1725 = vmatprep.subr.bf16.mxu0 %v1517
        %1726 = vmatpush1.bf16.msra.mxu0 %v1516
        %1727 = vmatprep.subr.bf16.mxu0 %v1519
        %1728 = vmatpush1.bf16.msra.mxu0 %v1518
        %1729 = vmatprep.subr.bf16.mxu0 %v1521
        %1730 = vmatpush1.bf16.msra.mxu0 %v1520
        %1731 = vmatprep.subr.bf16.mxu0 %v1523
        %1732 = vmatpush1.bf16.msra.mxu0 %v1522
        %1733 = vmatprep.subr.bf16.mxu0 %v1525
        %1734 = vmatpush1.bf16.msra.mxu0 %v1524
        %1735 = vmatprep.subr.bf16.mxu0 %v1527
        %1736 = vmatpush1.bf16.msra.mxu0 %v1526
        %1737 = vmatprep.subr.bf16.mxu0 %v1529
        %1738 = vmatpush1.bf16.msra.mxu0 %v1528
        %1739 = vmatprep.subr.bf16.mxu0 %v1531
        %1740 = vmatpush1.bf16.msra.mxu0 %v1530
        %1741 = vmatprep.subr.bf16.mxu0 %v1533
        %1742 = vmatpush1.bf16.msra.mxu0 %v1532
        %1743 = vmatprep.subr.bf16.mxu0 %v1535
        %1744 = vmatpush1.bf16.msra.mxu0 %v1534
        %1745 = vmatprep.subr.bf16.mxu0 %v1537
        %1746 = vmatpush1.bf16.msra.mxu0 %v1536
        %1747 = vmatprep.mubr.bf16.mxu0 %v1177
        %1748 = vmatmul.mubr.bf16.gmra.mrb[0].mxu0 %v1176
        %v1749 = vpop.f32.mrb[0].mxu0
        %v1750 = vadd.f32 %v1637, %v1749
        %v1751 = vpop.f32.mrb[0].mxu0
        %v1752 = vadd.f32 %v1639, %v1751
        %v1753 = vpop.f32.mrb[0].mxu0
        %v1754 = vadd.f32 %v1641, %v1753
        %v1755 = vpop.f32.mrb[0].mxu0
        %v1756 = vadd.f32 %v1643, %v1755
        %1757 = vmatprep.mubr.bf16.mxu0 %v1181
        %1758 = vmatmul.mubr.bf16.gmra.mrb[0].mxu0 %v1180
        %v1759 = vpop.f32.mrb[0].mxu0
        %v1760 = vadd.f32 %v1647, %v1759
        %v1761 = vpop.f32.mrb[0].mxu0
        %v1762 = vadd.f32 %v1649, %v1761
        %v1763 = vpop.f32.mrb[0].mxu0
        %v1764 = vadd.f32 %v1651, %v1763
        %v1765 = vpop.f32.mrb[0].mxu0
        %v1766 = vadd.f32 %v1653, %v1765
        %1767 = vmatprep.mubr.bf16.mxu0 %v1185
        %1768 = vmatmul.mubr.bf16.gmra.mrb[0].mxu0 %v1184
        %v1769 = vpop.f32.mrb[0].mxu0
        %v1770 = vadd.f32 %v1657, %v1769
        %v1771 = vpop.f32.mrb[0].mxu0
        %v1772 = vadd.f32 %v1659, %v1771
        %v1773 = vpop.f32.mrb[0].mxu0
        %v1774 = vadd.f32 %v1661, %v1773
        %v1775 = vpop.f32.mrb[0].mxu0
        %v1776 = vadd.f32 %v1663, %v1775
        %1777 = vmatprep.mubr.bf16.mxu0 %v1189
        %1778 = vmatmul.mubr.bf16.gmra.mrb[0].mxu0 %v1188
        %v1779 = vpop.f32.mrb[0].mxu0
        %v1780 = vadd.f32 %v1667, %v1779
        %v1781 = vpop.f32.mrb[0].mxu0
        %v1782 = vadd.f32 %v1669, %v1781
        %v1783 = vpop.f32.mrb[0].mxu0
        %v1784 = vadd.f32 %v1671, %v1783
        %v1785 = vpop.f32.mrb[0].mxu0
        %v1786 = vadd.f32 %v1673, %v1785
        %1787 = vmatprep.mubr.bf16.mxu0 %v1193
        %1788 = vmatmul.mubr.bf16.gmra.mrb[0].mxu0 %v1192
        %v1789 = vpop.f32.mrb[0].mxu0
        %v1790 = vadd.f32 %v1677, %v1789
        %v1791 = vpop.f32.mrb[0].mxu0
        %v1792 = vadd.f32 %v1679, %v1791
        %v1793 = vpop.f32.mrb[0].mxu0
        %v1794 = vadd.f32 %v1681, %v1793
        %v1795 = vpop.f32.mrb[0].mxu0
        %v1796 = vadd.f32 %v1683, %v1795
        %1797 = vmatprep.mubr.bf16.mxu0 %v1197
        %1798 = vmatmul.mubr.bf16.gmra.mrb[0].mxu0 %v1196
        %v1799 = vpop.f32.mrb[0].mxu0
        %v1800 = vadd.f32 %v1687, %v1799
        %v1801 = vpop.f32.mrb[0].mxu0
        %v1802 = vadd.f32 %v1689, %v1801
        %v1803 = vpop.f32.mrb[0].mxu0
        %v1804 = vadd.f32 %v1691, %v1803
        %v1805 = vpop.f32.mrb[0].mxu0
        %v1806 = vadd.f32 %v1693, %v1805
        %1807 = vmatprep.mubr.bf16.mxu0 %v1201
        %1808 = vmatmul.mubr.bf16.gmra.mrb[0].mxu0 %v1200
        %v1809 = vpop.f32.mrb[0].mxu0
        %v1810 = vadd.f32 %v1697, %v1809
        %v1811 = vpop.f32.mrb[0].mxu0
        %v1812 = vadd.f32 %v1699, %v1811
        %v1813 = vpop.f32.mrb[0].mxu0
        %v1814 = vadd.f32 %v1701, %v1813
        %v1815 = vpop.f32.mrb[0].mxu0
        %v1816 = vadd.f32 %v1703, %v1815
        %1817 = vmatprep.mubr.bf16.mxu0 %v1205
        %1818 = vmatmul.mubr.bf16.gmra.mrb[0].mxu0 %v1204
        %v1819 = vpop.f32.mrb[0].mxu0
        %v1820 = vadd.f32 %v1707, %v1819
        %v1821 = vpop.f32.mrb[0].mxu0
        %v1822 = vadd.f32 %v1709, %v1821
        %v1823 = vpop.f32.mrb[0].mxu0
        %v1824 = vadd.f32 %v1711, %v1823
        %v1825 = vpop.f32.mrb[0].mxu0
        %v1826 = vadd.f32 %v1713, %v1825
        %1827 = vdwg.mxu0
        %v1828 = vmax.f32 %v1750, 0.0
        %v1829 = vmax.f32 %v1752, 0.0
        %v1830 = vmax.f32 %v1754, 0.0
        %v1831 = vmax.f32 %v1756, 0.0
        %v1832 = vmax.f32 %v1760, 0.0
        %v1833 = vmax.f32 %v1762, 0.0
        %v1834 = vmax.f32 %v1764, 0.0
        %v1835 = vmax.f32 %v1766, 0.0
        %v1836 = vmax.f32 %v1770, 0.0
        %v1837 = vmax.f32 %v1772, 0.0
        %v1838 = vmax.f32 %v1774, 0.0
        %v1839 = vmax.f32 %v1776, 0.0
        %v1840 = vmax.f32 %v1780, 0.0
        %v1841 = vmax.f32 %v1782, 0.0
        %v1842 = vmax.f32 %v1784, 0.0
        %v1843 = vmax.f32 %v1786, 0.0
        %v1844 = vmax.f32 %v1790, 0.0
        %v1845 = vmax.f32 %v1792, 0.0
        %v1846 = vmax.f32 %v1794, 0.0
        %v1847 = vmax.f32 %v1796, 0.0
        %v1848 = vmax.f32 %v1800, 0.0
        %v1849 = vmax.f32 %v1802, 0.0
        %v1850 = vmax.f32 %v1804, 0.0
        %v1851 = vmax.f32 %v1806, 0.0
        %v1852 = vmax.f32 %v1810, 0.0
        %v1853 = vmax.f32 %v1812, 0.0
        %v1854 = vmax.f32 %v1814, 0.0
        %v1855 = vmax.f32 %v1816, 0.0
        %v1856 = vmax.f32 %v1820, 0.0
        %v1857 = vmax.f32 %v1822, 0.0
        %v1858 = vmax.f32 %v1824, 0.0
        %v1859 = vmax.f32 %v1826, 0.0
        %v1860 = vpack.c.bf16 %v1830, %v1828
        %v1861 = vpack.c.bf16 %v1831, %v1829
        %v1862 = vpack.c.bf16 %v1834, %v1832
        %v1863 = vpack.c.bf16 %v1835, %v1833
        %v1864 = vpack.c.bf16 %v1838, %v1836
        %v1865 = vpack.c.bf16 %v1839, %v1837
        %v1866 = vpack.c.bf16 %v1842, %v1840
        %v1867 = vpack.c.bf16 %v1843, %v1841
        %v1868 = vpack.c.bf16 %v1846, %v1844
        %v1869 = vpack.c.bf16 %v1847, %v1845
        %v1870 = vpack.c.bf16 %v1850, %v1848
        %v1871 = vpack.c.bf16 %v1851, %v1849
        %v1872 = vpack.c.bf16 %v1854, %v1852
        %v1873 = vpack.c.bf16 %v1855, %v1853
        %v1874 = vpack.c.bf16 %v1858, %v1856
        %v1875 = vpack.c.bf16 %v1859, %v1857
        %v1876 = vld [vmem:[#allocation11] sm:$0xf]
        %v1877 = vld [vmem:[#allocation11 + $0x4] sm:$0xf]
        %v1878 = vld [vmem:[#allocation11 + $0x8] sm:$0xf]
        %v1879 = vld [vmem:[#allocation11 + $0xc] sm:$0xf]
        %v1880 = vld [vmem:[#allocation11 + $0x10] sm:$0xf]
        %v1881 = vld [vmem:[#allocation11 + $0x14] sm:$0xf]
        %v1882 = vld [vmem:[#allocation11 + $0x18] sm:$0xf]
        %v1883 = vld [vmem:[#allocation11 + $0x1c] sm:$0xf]
        %v1884 = vld [vmem:[#allocation11 + $0x20] sm:$0xf]
        %v1885 = vld [vmem:[#allocation11 + $0x24] sm:$0xf]
        %v1886 = vld [vmem:[#allocation11 + $0x28] sm:$0xf]
        %v1887 = vld [vmem:[#allocation11 + $0x2c] sm:$0xf]
        %v1888 = vld [vmem:[#allocation11 + $0x30] sm:$0xf]
        %v1889 = vld [vmem:[#allocation11 + $0x34] sm:$0xf]
        %v1890 = vld [vmem:[#allocation11 + $0x38] sm:$0xf]
        %v1891 = vld [vmem:[#allocation11 + $0x3c] sm:$0xf]
        %v1892 = vld [vmem:[#allocation11 + $0x40] sm:$0xf]
        %v1893 = vld [vmem:[#allocation11 + $0x44] sm:$0xf]
        %v1894 = vld [vmem:[#allocation11 + $0x48] sm:$0xf]
        %v1895 = vld [vmem:[#allocation11 + $0x4c] sm:$0xf]
        %v1896 = vld [vmem:[#allocation11 + $0x50] sm:$0xf]
        %v1897 = vld [vmem:[#allocation11 + $0x54] sm:$0xf]
        %v1898 = vld [vmem:[#allocation11 + $0x58] sm:$0xf]
        %v1899 = vld [vmem:[#allocation11 + $0x5c] sm:$0xf]
        %v1900 = vld [vmem:[#allocation11 + $0x60] sm:$0xf]
        %v1901 = vld [vmem:[#allocation11 + $0x64] sm:$0xf]
        %v1902 = vld [vmem:[#allocation11 + $0x68] sm:$0xf]
        %v1903 = vld [vmem:[#allocation11 + $0x6c] sm:$0xf]
        %v1904 = vld [vmem:[#allocation11 + $0x70] sm:$0xf]
        %v1905 = vld [vmem:[#allocation11 + $0x74] sm:$0xf]
        %v1906 = vld [vmem:[#allocation11 + $0x78] sm:$0xf]
        %v1907 = vld [vmem:[#allocation11 + $0x7c] sm:$0xf]
        %v1908 = vld [vmem:[#allocation13] sm:$0x1]
        %v1910 = vlaneseq
        %v1911 = vshrl.u32 %v1910, 7
        %v1912 = vsub.s32 0, %v1911
        %v1913 = vrot.slane %v1908, %v1912
        %v1947 = vunpack.c.l.b16 %v1876
        %v1948 = vunpack.c.l.b16 %v1877
        %v1949 = vunpack.c.l.b16 %v1878
        %v1950 = vunpack.c.l.b16 %v1879
        %v1951 = vunpack.c.l.b16 %v1880
        %v1952 = vunpack.c.l.b16 %v1881
        %v1953 = vunpack.c.l.b16 %v1882
        %v1954 = vunpack.c.l.b16 %v1883
        %v1955 = vunpack.c.l.b16 %v1884
        %v1956 = vunpack.c.l.b16 %v1885
        %v1957 = vunpack.c.l.b16 %v1886
        %v1958 = vunpack.c.l.b16 %v1887
        %v1959 = vunpack.c.l.b16 %v1888
        %v1960 = vunpack.c.l.b16 %v1889
        %v1961 = vunpack.c.l.b16 %v1890
        %v1962 = vunpack.c.l.b16 %v1891
        %v1963 = vunpack.c.l.b16 %v1892
        %v1964 = vunpack.c.l.b16 %v1893
        %v1965 = vunpack.c.l.b16 %v1894
        %v1966 = vunpack.c.l.b16 %v1895
        %v1967 = vunpack.c.l.b16 %v1896
        %v1968 = vunpack.c.l.b16 %v1897
        %v1969 = vunpack.c.l.b16 %v1898
        %v1970 = vunpack.c.l.b16 %v1899
        %v1971 = vunpack.c.l.b16 %v1900
        %v1972 = vunpack.c.l.b16 %v1901
        %v1973 = vunpack.c.l.b16 %v1902
        %v1974 = vunpack.c.l.b16 %v1903
        %v1975 = vunpack.c.l.b16 %v1904
        %v1976 = vunpack.c.l.b16 %v1905
        %v1977 = vunpack.c.l.b16 %v1906
        %v1978 = vunpack.c.l.b16 %v1907
        %v1979 = vpack.c.b16 %v1948, %v1947
        %v1980 = vpack.c.b16 %v1950, %v1949
        %v1981 = vpack.c.b16 %v1952, %v1951
        %v1982 = vpack.c.b16 %v1954, %v1953
        %v1983 = vpack.c.b16 %v1956, %v1955
        %v1984 = vpack.c.b16 %v1958, %v1957
        %v1985 = vpack.c.b16 %v1960, %v1959
        %v1986 = vpack.c.b16 %v1962, %v1961
        %v1987 = vpack.c.b16 %v1964, %v1963
        %v1988 = vpack.c.b16 %v1966, %v1965
        %v1989 = vpack.c.b16 %v1968, %v1967
        %v1990 = vpack.c.b16 %v1970, %v1969
        %v1991 = vpack.c.b16 %v1972, %v1971
        %v1992 = vpack.c.b16 %v1974, %v1973
        %v1993 = vpack.c.b16 %v1976, %v1975
        %v1994 = vpack.c.b16 %v1978, %v1977
        %2011 = vmatprep.subr.bf16.mxu0 0
        %2012 = vmatpush1.bf16.msra.mxu0 %v1979
        %2013 = vmatprep.subr.bf16.mxu0 0
        %2014 = vmatpush1.bf16.msra.mxu0 %v1980
        %2015 = vmatprep.subr.bf16.mxu0 0
        %2016 = vmatpush1.bf16.msra.mxu0 %v1981
        %2017 = vmatprep.subr.bf16.mxu0 0
        %2018 = vmatpush1.bf16.msra.mxu0 %v1982
        %2019 = vmatprep.subr.bf16.mxu0 0
        %2020 = vmatpush1.bf16.msra.mxu0 %v1983
        %2021 = vmatprep.subr.bf16.mxu0 0
        %2022 = vmatpush1.bf16.msra.mxu0 %v1984
        %2023 = vmatprep.subr.bf16.mxu0 0
        %2024 = vmatpush1.bf16.msra.mxu0 %v1985
        %2025 = vmatprep.subr.bf16.mxu0 0
        %2026 = vmatpush1.bf16.msra.mxu0 %v1986
        %2027 = vmatprep.subr.bf16.mxu0 0
        %2028 = vmatpush1.bf16.msra.mxu0 %v1987
        %2029 = vmatprep.subr.bf16.mxu0 0
        %2030 = vmatpush1.bf16.msra.mxu0 %v1988
        %2031 = vmatprep.subr.bf16.mxu0 0
        %2032 = vmatpush1.bf16.msra.mxu0 %v1989
        %2033 = vmatprep.subr.bf16.mxu0 0
        %2034 = vmatpush1.bf16.msra.mxu0 %v1990
        %2035 = vmatprep.subr.bf16.mxu0 0
        %2036 = vmatpush1.bf16.msra.mxu0 %v1991
        %2037 = vmatprep.subr.bf16.mxu0 0
        %2038 = vmatpush1.bf16.msra.mxu0 %v1992
        %2039 = vmatprep.subr.bf16.mxu0 0
        %2040 = vmatpush1.bf16.msra.mxu0 %v1993
        %2041 = vmatprep.subr.bf16.mxu0 0
        %2042 = vmatpush1.bf16.msra.mxu0 %v1994
        %2043 = vmatprep.mubr.bf16.mxu0 %v1861
        %2044 = vmatmul.mubr.bf16.gmra.mrb[0].mxu0 %v1860
        %v2045 = vpop.f32.mrb[0].mxu0
        %v2046 = vadd.f32 %v1913, %v2045
        %v2047 = vpop.f32.mrb[0].mxu0
        %v2048 = vpop.f32.mrb[0].mxu0
        %v2049 = vadd.f32 %v1913, %v2048
        %v2050 = vpop.f32.mrb[0].mxu0
        %2051 = vmatprep.mubr.bf16.mxu0 %v1863
        %2052 = vmatmul.mubr.bf16.gmra.mrb[0].mxu0 %v1862
        %v2053 = vpop.f32.mrb[0].mxu0
        %v2054 = vadd.f32 %v1913, %v2053
        %v2055 = vpop.f32.mrb[0].mxu0
        %v2056 = vpop.f32.mrb[0].mxu0
        %v2057 = vadd.f32 %v1913, %v2056
        %v2058 = vpop.f32.mrb[0].mxu0
        %2059 = vmatprep.mubr.bf16.mxu0 %v1865
        %2060 = vmatmul.mubr.bf16.gmra.mrb[0].mxu0 %v1864
        %v2061 = vpop.f32.mrb[0].mxu0
        %v2062 = vadd.f32 %v1913, %v2061
        %v2063 = vpop.f32.mrb[0].mxu0
        %v2064 = vpop.f32.mrb[0].mxu0
        %v2065 = vadd.f32 %v1913, %v2064
        %v2066 = vpop.f32.mrb[0].mxu0
        %2067 = vmatprep.mubr.bf16.mxu0 %v1867
        %2068 = vmatmul.mubr.bf16.gmra.mrb[0].mxu0 %v1866
        %v2069 = vpop.f32.mrb[0].mxu0
        %v2070 = vadd.f32 %v1913, %v2069
        %v2071 = vpop.f32.mrb[0].mxu0
        %v2072 = vpop.f32.mrb[0].mxu0
        %v2073 = vadd.f32 %v1913, %v2072
        %v2074 = vpop.f32.mrb[0].mxu0
        %2075 = vmatprep.mubr.bf16.mxu0 %v1869
        %2076 = vmatmul.mubr.bf16.gmra.mrb[0].mxu0 %v1868
        %v2077 = vpop.f32.mrb[0].mxu0
        %v2078 = vadd.f32 %v1913, %v2077
        %v2079 = vpop.f32.mrb[0].mxu0
        %v2080 = vpop.f32.mrb[0].mxu0
        %v2081 = vadd.f32 %v1913, %v2080
        %v2082 = vpop.f32.mrb[0].mxu0
        %2083 = vmatprep.mubr.bf16.mxu0 %v1871
        %2084 = vmatmul.mubr.bf16.gmra.mrb[0].mxu0 %v1870
        %v2085 = vpop.f32.mrb[0].mxu0
        %v2086 = vadd.f32 %v1913, %v2085
        %v2087 = vpop.f32.mrb[0].mxu0
        %v2088 = vpop.f32.mrb[0].mxu0
        %v2089 = vadd.f32 %v1913, %v2088
        %v2090 = vpop.f32.mrb[0].mxu0
        %2091 = vmatprep.mubr.bf16.mxu0 %v1873
        %2092 = vmatmul.mubr.bf16.gmra.mrb[0].mxu0 %v1872
        %v2093 = vpop.f32.mrb[0].mxu0
        %v2094 = vadd.f32 %v1913, %v2093
        %v2095 = vpop.f32.mrb[0].mxu0
        %v2096 = vpop.f32.mrb[0].mxu0
        %v2097 = vadd.f32 %v1913, %v2096
        %v2098 = vpop.f32.mrb[0].mxu0
        %2099 = vmatprep.mubr.bf16.mxu0 %v1875
        %2100 = vmatmul.mubr.bf16.gmra.mrb[0].mxu0 %v1874
        %v2101 = vpop.f32.mrb[0].mxu0
        %v2102 = vadd.f32 %v1913, %v2101
        %v2103 = vpop.f32.mrb[0].mxu0
        %v2104 = vpop.f32.mrb[0].mxu0
        %v2105 = vadd.f32 %v1913, %v2104
        %v2106 = vpop.f32.mrb[0].mxu0
        %2107 = vdwg.mxu0
        %v2108 = vmul.f32 %v2046, %v2046
        %v2109 = vmul.f32 %v2049, %v2049
        %v2110 = vmul.f32 %v2054, %v2054
        %v2111 = vmul.f32 %v2057, %v2057
        %v2112 = vmul.f32 %v2062, %v2062
        %v2113 = vmul.f32 %v2065, %v2065
        %v2114 = vmul.f32 %v2070, %v2070
        %v2115 = vmul.f32 %v2073, %v2073
        %v2116 = vmul.f32 %v2078, %v2078
        %v2117 = vmul.f32 %v2081, %v2081
        %v2118 = vmul.f32 %v2086, %v2086
        %v2119 = vmul.f32 %v2089, %v2089
        %v2120 = vmul.f32 %v2094, %v2094
        %v2121 = vmul.f32 %v2097, %v2097
        %v2122 = vmul.f32 %v2102, %v2102
        %v2123 = vmul.f32 %v2105, %v2105
        %2124 = vadd.xlane.f32.xlu0 %v2108
        %v2125 = vpop.xlane.xlu0 %2124
        %2126 = vadd.xlane.f32.xlu0 %v2109
        %v2127 = vpop.xlane.xlu0 %2126
        %2128 = vadd.xlane.f32.xlu0 %v2110
        %v2129 = vpop.xlane.xlu0 %2128
        %2130 = vadd.xlane.f32.xlu0 %v2111
        %v2131 = vpop.xlane.xlu0 %2130
        %2132 = vadd.xlane.f32.xlu0 %v2112
        %v2133 = vpop.xlane.xlu0 %2132
        %2134 = vadd.xlane.f32.xlu0 %v2113
        %v2135 = vpop.xlane.xlu0 %2134
        %2136 = vadd.xlane.f32.xlu0 %v2114
        %v2137 = vpop.xlane.xlu0 %2136
        %2138 = vadd.xlane.f32.xlu0 %v2115
        %v2139 = vpop.xlane.xlu0 %2138
        %2140 = vadd.xlane.f32.xlu0 %v2116
        %v2141 = vpop.xlane.xlu0 %2140
        %2142 = vadd.xlane.f32.xlu0 %v2117
        %v2143 = vpop.xlane.xlu0 %2142
        %2144 = vadd.xlane.f32.xlu0 %v2118
        %v2145 = vpop.xlane.xlu0 %2144
        %2146 = vadd.xlane.f32.xlu0 %v2119
        %v2147 = vpop.xlane.xlu0 %2146
        %2148 = vadd.xlane.f32.xlu0 %v2120
        %v2149 = vpop.xlane.xlu0 %2148
        %2150 = vadd.xlane.f32.xlu0 %v2121
        %v2151 = vpop.xlane.xlu0 %2150
        %2152 = vadd.xlane.f32.xlu0 %v2122
        %v2153 = vpop.xlane.xlu0 %2152
        %2154 = vadd.xlane.f32.xlu0 %v2123
        %v2155 = vpop.xlane.xlu0 %2154
        %v2156 = vmax.f32 %v2125, 1e-24
        %v2157 = vmax.f32 %v2127, 1e-24
        %v2158 = vmax.f32 %v2129, 1e-24
        %v2159 = vmax.f32 %v2131, 1e-24
        %v2160 = vmax.f32 %v2133, 1e-24
        %v2161 = vmax.f32 %v2135, 1e-24
        %v2162 = vmax.f32 %v2137, 1e-24
        %v2163 = vmax.f32 %v2139, 1e-24
        %v2164 = vmax.f32 %v2141, 1e-24
        %v2165 = vmax.f32 %v2143, 1e-24
        %v2166 = vmax.f32 %v2145, 1e-24
        %v2167 = vmax.f32 %v2147, 1e-24
        %v2168 = vmax.f32 %v2149, 1e-24
        %v2169 = vmax.f32 %v2151, 1e-24
        %v2170 = vmax.f32 %v2153, 1e-24
        %v2171 = vmax.f32 %v2155, 1e-24
        %v2172 = vrsqrt.pop %v2156
        %v2173 = vrsqrt.pop %v2157
        %v2174 = vrsqrt.pop %v2158
        %v2175 = vrsqrt.pop %v2159
        %v2176 = vrsqrt.pop %v2160
        %v2177 = vrsqrt.pop %v2161
        %v2178 = vrsqrt.pop %v2162
        %v2179 = vrsqrt.pop %v2163
        %v2180 = vrsqrt.pop %v2164
        %v2181 = vrsqrt.pop %v2165
        %v2182 = vrsqrt.pop %v2166
        %v2183 = vrsqrt.pop %v2167
        %v2184 = vrsqrt.pop %v2168
        %v2185 = vrsqrt.pop %v2169
        %v2186 = vrsqrt.pop %v2170
        %v2187 = vrsqrt.pop %v2171
        %v2188 = vmul.f32 %v2046, %v2172
        %v2189 = vmul.f32 %v2049, %v2173
        %v2190 = vmul.f32 %v2054, %v2174
        %v2191 = vmul.f32 %v2057, %v2175
        %v2192 = vmul.f32 %v2062, %v2176
        %v2193 = vmul.f32 %v2065, %v2177
        %v2194 = vmul.f32 %v2070, %v2178
        %v2195 = vmul.f32 %v2073, %v2179
        %v2196 = vmul.f32 %v2078, %v2180
        %v2197 = vmul.f32 %v2081, %v2181
        %v2198 = vmul.f32 %v2086, %v2182
        %v2199 = vmul.f32 %v2089, %v2183
        %v2200 = vmul.f32 %v2094, %v2184
        %v2201 = vmul.f32 %v2097, %v2185
        %v2202 = vmul.f32 %v2102, %v2186
        %v2203 = vmul.f32 %v2105, %v2187
        %2204 = vst [vmem:[%s378] sm:$0xff] %v2188
        %2205 = vst [vmem:[%s378 + $0x8] sm:$0xff] %v2189
        %2206 = vst [vmem:[%s378 + $0x10] sm:$0xff] %v2190
        %2207 = vst [vmem:[%s378 + $0x18] sm:$0xff] %v2191
        %2208 = vst [vmem:[%s378 + $0x20] sm:$0xff] %v2192
        %2209 = vst [vmem:[%s378 + $0x28] sm:$0xff] %v2193
        %2210 = vst [vmem:[%s378 + $0x30] sm:$0xff] %v2194
        %2211 = vst [vmem:[%s378 + $0x38] sm:$0xff] %v2195
        %2212 = vst [vmem:[%s378 + $0x40] sm:$0xff] %v2196
        %2213 = vst [vmem:[%s378 + $0x48] sm:$0xff] %v2197
        %2214 = vst [vmem:[%s378 + $0x50] sm:$0xff] %v2198
        %2215 = vst [vmem:[%s378 + $0x58] sm:$0xff] %v2199
        %2216 = vst [vmem:[%s378 + $0x60] sm:$0xff] %v2200
        %2217 = vst [vmem:[%s378 + $0x68] sm:$0xff] %v2201
        %2218 = vst [vmem:[%s378 + $0x70] sm:$0xff] %v2202
        %2219 = vst [vmem:[%s378 + $0x78] sm:$0xff] %v2203
        %s2220 = sand.u32 %s187, 1
        %s2221 = scalar_lea.sflag [#allocation4], %s2220
        %s2222 = sand.u32 %s187, 1
        %s2223 = smul.addr %s2222, 128
        %s2224 = scalar_lea.vmem [#allocation14], %s2223
        // Predicated region
        $region77: #{tpu_custom_call.1} parent=47 // pred_check
          %p2225 = pneg %p197
        $region78: #{tpu_custom_call.1} parent=47 // pred_check_branch
          %2227 = sbr.rel (%p2225) target = $region80
        $region79: #{tpu_custom_call.1} parent=47 // pred_region
          %s2228 = smul.u32 16, %s27
          %s2230 = ssub.s32 2048, 2048
          %2231 = vsyncadd %s2221, %s2230
          %s2232 = smul.addr %s2228, 128
          %s2233 = scalar_lea.hbm %s7, %s2232
          %s2234 = sshll.u32 %s2224, 4
          %s2235 = int_to_ptr.vmem [resolvable:$true] %s2234
          %2240 = dma.vmem_to_hbm [thread:$0]  %s2235, 2048, %s2233, %s2221, 128, 128, 8
        $region80: #{tpu_custom_call.1} parent=47 // pred_fallthru
          _
      $region48: #{tpu_custom_call.1} parent=5 // pred_fallthru
        _
      %p2241 = scmp.le.s32.totalorder 2, %s22
      // Predicated region
      $region81: #{tpu_custom_call.1} parent=5 // pred_check
        %p2242 = pneg %p2241
      $region82: #{tpu_custom_call.1} parent=5 // pred_check_branch
        %2244 = sbr.rel (%p2242) target = $region84
      $region83: #{tpu_custom_call.1} parent=5 // pred_region
        %s2245 = ssub.s32 %s22, 2
        // Predicated region
        $region85: #{tpu_custom_call.1} parent=83 // pred_check
          %p2246 = pneg %p203
        $region86: #{tpu_custom_call.1} parent=83 // pred_check_branch
          %2248 = sbr.rel (%p2246) target = $region88
        $region87: #{tpu_custom_call.1} parent=83 // pred_region
          %s2249 = sand.u32 %s188, 1
          %s2250 = scalar_lea.sflag [#allocation4], %s2249
          %s2251 = sand.u32 %s188, 1
          %s2252 = smul.addr %s2251, 128
          %s2253 = scalar_lea.vmem [#allocation14], %s2252
          %2254 = dma.done %s2250, 2048
        $region88: #{tpu_custom_call.1} parent=83 // pred_fallthru
          _
      $region84: #{tpu_custom_call.1} parent=5 // pred_fallthru
        _
    $region6: #{tpu_custom_call.1} parent=1 // loop_footer
      %s26 = sadd.s32 1, %s22
    $region7: #{tpu_custom_call.1} parent=1 // loop_footer_branch
      %21 = sbr.rel target = $region3
    $region8: #{tpu_custom_call.1} parent=1 // loop_exit
      _
    %2255 = vsyncpa [#allocation3], 1
    %s2256 = scalar_lea.sflag [#allocation3], 1
    %2257 = vsyncpa %s2256, 1
    %2258 = vsyncpa [#allocation6], 1
    %2259 = vsyncpa [#allocation9], 1
    %2260 = vsyncpa [#allocation12], 1
    %2261 = vsyncpa [#allocation4], 1
    %s2262 = scalar_lea.sflag [#allocation4], 1
    %2263 = vsyncpa %s2262, 1

</llo_original>
